<compile_context>
chip_gen: v5e
topology: v5e:2x2
jax: 0.10.0
libtpu: 0.0.40
codegen_flags: <defaults>
</compile_context>

<pallas_src>
import math
from functools import partial

import jax
import jax.numpy as jnp
from jax.experimental import pallas as pl
from jax.experimental.pallas import tpu as pltpu


# ----------------------------------------------------------------------------
# Fused Pallas kernel: the whole GCN forward for one batch element.
# ----------------------------------------------------------------------------
def _gcn_fused_kernel(x_ref,
                      w1_ref, att1_ref, b1_ref, s1_ref, h1_ref,
                      wb_ref, attb_ref, bb_ref, sb_ref, hb_ref,
                      w7_ref, att7_ref, b7_ref,
                      o_ref, *, num_blocks):
    f32 = jnp.float32
    x = x_ref[0].astype(f32)                                            # (n, f_in)

    # ---- gc1 + bn1(eval) + tanh ------------------------------------------
    # f_in < hidden  =>  (att @ x) @ W   (fewer MACs than att @ (x @ W))
    ax = jnp.dot(att1_ref[...], x, preferred_element_type=f32)          # (n, f_in)
    y = jnp.dot(ax, w1_ref[...], preferred_element_type=f32) + b1_ref[...]
    y = jnp.tanh(y * s1_ref[...] + h1_ref[...])                         # (n, hid)

    # ---- residual GC_Blocks (eval-mode dropout == identity) ---------------
    for blk in range(num_blocks):
        res = y
        for j in range(2):
            l = 2 * blk + j                                             # static
            sup = jnp.dot(y, wb_ref[l], preferred_element_type=f32)     # (n, hid)
            y = jnp.dot(attb_ref[l], sup, preferred_element_type=f32) + bb_ref[l]
            y = jnp.tanh(y * sb_ref[l] + hb_ref[l])
        y = y + res

    # ---- gc7 + residual x --------------------------------------------------
    # hidden > f_in  =>  att @ (y @ W)
    sup = jnp.dot(y, w7_ref[...], preferred_element_type=f32)           # (n, f_in)
    out = jnp.dot(att7_ref[...], sup, preferred_element_type=f32) + b7_ref[...]
    o_ref[0] = (out + x).astype(o_ref.dtype)


def gcn_forward(x, params, num_stage):
    """Full eval-mode GCN forward in a single fused Pallas kernel."""
    b, n, f_in = x.shape
    hid = params["w1"].shape[1]
    L = 2 * num_stage                      # number of hidden GC layers

    const2 = lambda i: (0, 0)
    const3 = lambda i: (0, 0, 0)
    kernel = partial(_gcn_fused_kernel, num_blocks=num_stage)

    outputs = pl.pallas_call(
        kernel,
        out_shape=jax.ShapeDtypeStruct((b, n, f_in), jnp.float32),
        grid=(b,),
        in_specs=[
            pl.BlockSpec((1, n, f_in),   lambda i: (i, 0, 0)),   # x (per batch)
            pl.BlockSpec((f_in, hid),    const2),                # W1
            pl.BlockSpec((n, n),         const2),                # att1
            pl.BlockSpec((1, hid),       const2),                # b1
            pl.BlockSpec((n, hid),       const2),                # bn1 scale
            pl.BlockSpec((n, hid),       const2),                # bn1 shift
            pl.BlockSpec((L, hid, hid),  const3),                # block Ws
            pl.BlockSpec((L, n, n),      const3),                # block atts
            pl.BlockSpec((L, 1, hid),    const3),                # block biases
            pl.BlockSpec((L, n, hid),    const3),                # block bn scales
            pl.BlockSpec((L, n, hid),    const3),                # block bn shifts
            pl.BlockSpec((hid, f_in),    const2),                # W7
            pl.BlockSpec((n, n),         const2),                # att7
            pl.BlockSpec((1, f_in),      const2),                # b7
        ],
        out_specs=pl.BlockSpec((1, n, f_in), lambda i: (i, 0, 0)),
        compiler_params=pltpu.CompilerParams(
            dimension_semantics=("parallel",)),
    )(x,
      params["w1"], params["att1"], params["b1"], params["s1"], params["h1"],
      params["wb"], params["attb"], params["bb"], params["sb"], params["hb"],
      params["w7"], params["att7"], params["b7"])

    # variational=False branch of the reference module
    reconstructions_mu = 1
    reconstructions_log_var = 1
    z_latent = 1
    return outputs, reconstructions_mu, reconstructions_log_var, z_latent


# ----------------------------------------------------------------------------
# Deterministic parameter construction (mirrors reset_parameters())
# ----------------------------------------------------------------------------
def init_graph_conv(key, in_f, out_f, node_n):
    stdv = 1.0 / math.sqrt(out_f)
    k1, k2, k3 = jax.random.split(key, 3)
    w = jax.random.uniform(k1, (in_f, out_f), jnp.float32, -stdv, stdv)
    att = jax.random.uniform(k2, (node_n, node_n), jnp.float32, -stdv, stdv)
    b = jax.random.uniform(k3, (out_f,), jnp.float32, -stdv, stdv)
    return w, att, b


def bn_eval_affine(node_n, feat, eps=1e-5):
    # PyTorch BatchNorm1d defaults: gamma=1, beta=0, running_mean=0, running_var=1
    gamma = jnp.ones((node_n * feat,), jnp.float32)
    beta = jnp.zeros((node_n * feat,), jnp.float32)
    running_mean = jnp.zeros((node_n * feat,), jnp.float32)
    running_var = jnp.ones((node_n * feat,), jnp.float32)
    scale = gamma / jnp.sqrt(running_var + eps)
    shift = beta - running_mean * scale
    return scale.reshape(node_n, feat), shift.reshape(node_n, feat)


def init_gcn_params(key, input_feature, hidden_feature, node_n, num_stage):
    keys = jax.random.split(key, 2 + 2 * num_stage)
    w1, att1, b1 = init_graph_conv(keys[0], input_feature, hidden_feature, node_n)
    s1, h1 = bn_eval_affine(node_n, hidden_feature)
    w7, att7, b7 = init_graph_conv(keys[1], hidden_feature, input_feature, node_n)

    wb, attb, bb, sb, hb = [], [], [], [], []
    for l in range(2 * num_stage):
        w, att, b = init_graph_conv(keys[2 + l], hidden_feature,
                                    hidden_feature, node_n)
        s, h = bn_eval_affine(node_n, hidden_feature)
        wb.append(w)
        attb.append(att)
        bb.append(b.reshape(1, hidden_feature))
        sb.append(s)
        hb.append(h)

    return {
        "w1": w1, "att1": att1, "b1": b1.reshape(1, hidden_feature),
        "s1": s1, "h1": h1,
        "wb": jnp.stack(wb), "attb": jnp.stack(attb), "bb": jnp.stack(bb),
        "sb": jnp.stack(sb), "hb": jnp.stack(hb),
        "w7": w7, "att7": att7, "b7": b7.reshape(1, input_feature),
    }


# ----------------------------------------------------------------------------
# Pure-JAX reference (for a numerical sanity check against the fused kernel)
# ----------------------------------------------------------------------------
def _gcn_reference(x, params, num_stage):
    def gc(y, w, att, b):
        return jnp.einsum("nm,bmf->bnf", att, jnp.matmul(y, w)) + b

    y = gc(x, params["w1"], params["att1"], params["b1"])
    y = jnp.tanh(y * params["s1"] + params["h1"])
    for blk in range(num_stage):
        res = y
        for j in range(2):
            l = 2 * blk + j
            y = gc(y, params["wb"][l], params["attb"][l], params["bb"][l])
            y = jnp.tanh(y * params["sb"][l] + params["hb"][l])
        y = y + res
    y = gc(y, params["w7"], params["att7"], params["b7"])
    return y + x


if __name__ == "__main__":
    # Small but module-consistent shapes.
    batch = 2
    node_n = 48            # module default
    input_feature = 16
    hidden_feature = 32
    num_stage = 2

    key = jax.random.PRNGKey(0)
    k_param, k_x = jax.random.split(key)
    params = init_gcn_params(k_param, input_feature, hidden_feature,
                             node_n, num_stage)
    x = jax.random.normal(k_x, (batch, node_n, input_feature), jnp.float32)

    fwd = jax.jit(partial(gcn_forward, num_stage=num_stage))
    outputs, rec_mu, rec_logvar, z_latent = fwd(x, params)
    outputs = jax.block_until_ready(outputs)

    assert outputs.shape == (batch, node_n, input_feature)
    assert bool(jnp.all(jnp.isfinite(outputs)))

    ref = _gcn_reference(x, params, num_stage)
    max_err = float(jnp.max(jnp.abs(outputs - ref)))
    assert max_err < 1e-2, f"mismatch vs reference: {max_err}"

    print("KERNEL_OK")
</pallas_src>

<mosaic_0001>
module attributes {stable_mosaic.version = 11 : i64} {
  func.func @_gcn_fused_kernel(%arg0: i32, %arg1: memref<1x48x16xf32, #tpu.memory_space<vmem>>, %arg2: memref<16x32xf32, #tpu.memory_space<vmem>>, %arg3: memref<48x48xf32, #tpu.memory_space<vmem>>, %arg4: memref<1x32xf32, #tpu.memory_space<vmem>>, %arg5: memref<48x32xf32, #tpu.memory_space<vmem>>, %arg6: memref<48x32xf32, #tpu.memory_space<vmem>>, %arg7: memref<4x32x32xf32, #tpu.memory_space<vmem>>, %arg8: memref<4x48x48xf32, #tpu.memory_space<vmem>>, %arg9: memref<4x1x32xf32, #tpu.memory_space<vmem>>, %arg10: memref<4x48x32xf32, #tpu.memory_space<vmem>>, %arg11: memref<4x48x32xf32, #tpu.memory_space<vmem>>, %arg12: memref<32x16xf32, #tpu.memory_space<vmem>>, %arg13: memref<48x48xf32, #tpu.memory_space<vmem>>, %arg14: memref<1x16xf32, #tpu.memory_space<vmem>>, %arg15: memref<1x48x16xf32, #tpu.memory_space<vmem>>) attributes {dimension_semantics = [#tpu.dimension_semantics<parallel>], iteration_bounds = array<i64: 2>, scalar_prefetch = 0 : i64, scratch_operands = 0 : i64, tpu.core_type = #tpu.core_type<tc>, window_params = [{transform_indices = @transform_0, window_bounds = array<i64: 1, 48, 16>}, {pipeline_mode = #tpu.pipeline_mode<synchronous>, transform_indices = @transform_1, window_bounds = array<i64: 16, 32>}, {pipeline_mode = #tpu.pipeline_mode<synchronous>, transform_indices = @transform_2, window_bounds = array<i64: 48, 48>}, {pipeline_mode = #tpu.pipeline_mode<synchronous>, transform_indices = @transform_3, window_bounds = array<i64: 1, 32>}, {pipeline_mode = #tpu.pipeline_mode<synchronous>, transform_indices = @transform_4, window_bounds = array<i64: 48, 32>}, {pipeline_mode = #tpu.pipeline_mode<synchronous>, transform_indices = @transform_5, window_bounds = array<i64: 48, 32>}, {pipeline_mode = #tpu.pipeline_mode<synchronous>, transform_indices = @transform_6, window_bounds = array<i64: 4, 32, 32>}, {pipeline_mode = #tpu.pipeline_mode<synchronous>, transform_indices = @transform_7, window_bounds = array<i64: 4, 48, 48>}, {pipeline_mode = #tpu.pipeline_mode<synchronous>, transform_indices = @transform_8, window_bounds = array<i64: 4, 1, 32>}, {pipeline_mode = #tpu.pipeline_mode<synchronous>, transform_indices = @transform_9, window_bounds = array<i64: 4, 48, 32>}, {pipeline_mode = #tpu.pipeline_mode<synchronous>, transform_indices = @transform_10, window_bounds = array<i64: 4, 48, 32>}, {pipeline_mode = #tpu.pipeline_mode<synchronous>, transform_indices = @transform_11, window_bounds = array<i64: 32, 16>}, {pipeline_mode = #tpu.pipeline_mode<synchronous>, transform_indices = @transform_12, window_bounds = array<i64: 48, 48>}, {pipeline_mode = #tpu.pipeline_mode<synchronous>, transform_indices = @transform_13, window_bounds = array<i64: 1, 16>}, {transform_indices = @transform_14, window_bounds = array<i64: 1, 48, 16>}]} {
    %c0 = arith.constant 0 : index
    %c0_0 = arith.constant 0 : index
    %c0_1 = arith.constant 0 : index
    %0 = vector.load %arg1[%c0, %c0_0, %c0_1] : memref<1x48x16xf32, #tpu.memory_space<vmem>>, vector<1x48x16xf32>
    %1 = vector.shape_cast %0 : vector<1x48x16xf32> to vector<48x16xf32>
    %c0_2 = arith.constant 0 : index
    %c0_3 = arith.constant 0 : index
    %2 = vector.load %arg3[%c0_2, %c0_3] : memref<48x48xf32, #tpu.memory_space<vmem>>, vector<48x48xf32>
    %cst = arith.constant dense<0.000000e+00> : vector<48x16xf32>
    %3 = tpu.matmul %2, %1, %cst {dimension_numbers = #tpu.dot_dimension_numbers<[1], [0], [0], [1], [0, 0, 1, 1], [], []>} : vector<48x48xf32>, vector<48x16xf32>, vector<48x16xf32> -> vector<48x16xf32>
    %c0_4 = arith.constant 0 : index
    %c0_5 = arith.constant 0 : index
    %4 = vector.load %arg2[%c0_4, %c0_5] : memref<16x32xf32, #tpu.memory_space<vmem>>, vector<16x32xf32>
    %cst_6 = arith.constant dense<0.000000e+00> : vector<48x32xf32>
    %5 = tpu.matmul %3, %4, %cst_6 {dimension_numbers = #tpu.dot_dimension_numbers<[1], [0], [0], [1], [0, 0, 1, 1], [], []>} : vector<48x16xf32>, vector<16x32xf32>, vector<48x32xf32> -> vector<48x32xf32>
    %c0_7 = arith.constant 0 : index
    %c0_8 = arith.constant 0 : index
    %6 = vector.load %arg4[%c0_7, %c0_8] : memref<1x32xf32, #tpu.memory_space<vmem>>, vector<1x32xf32>
    %7 = vector.broadcast %6 : vector<1x32xf32> to vector<48x32xf32>
    %8 = arith.addf %5, %7 : vector<48x32xf32>
    %c0_9 = arith.constant 0 : index
    %c0_10 = arith.constant 0 : index
    %9 = vector.load %arg5[%c0_9, %c0_10] : memref<48x32xf32, #tpu.memory_space<vmem>>, vector<48x32xf32>
    %10 = arith.mulf %8, %9 : vector<48x32xf32>
    %c0_11 = arith.constant 0 : index
    %c0_12 = arith.constant 0 : index
    %11 = vector.load %arg6[%c0_11, %c0_12] : memref<48x32xf32, #tpu.memory_space<vmem>>, vector<48x32xf32>
    %12 = arith.addf %10, %11 : vector<48x32xf32>
    %13 = math.tanh %12 : vector<48x32xf32>
    %c0_13 = arith.constant 0 : index
    %c0_14 = arith.constant 0 : index
    %c0_15 = arith.constant 0 : index
    %14 = vector.load %arg7[%c0_13, %c0_14, %c0_15] : memref<4x32x32xf32, #tpu.memory_space<vmem>>, vector<1x32x32xf32>
    %15 = vector.shape_cast %14 : vector<1x32x32xf32> to vector<32x32xf32>
    %cst_16 = arith.constant dense<0.000000e+00> : vector<48x32xf32>
    %16 = tpu.matmul %13, %15, %cst_16 {dimension_numbers = #tpu.dot_dimension_numbers<[1], [0], [0], [1], [0, 0, 1, 1], [], []>} : vector<48x32xf32>, vector<32x32xf32>, vector<48x32xf32> -> vector<48x32xf32>
    %c0_17 = arith.constant 0 : index
    %c0_18 = arith.constant 0 : index
    %c0_19 = arith.constant 0 : index
    %17 = vector.load %arg8[%c0_17, %c0_18, %c0_19] : memref<4x48x48xf32, #tpu.memory_space<vmem>>, vector<1x48x48xf32>
    %18 = vector.shape_cast %17 : vector<1x48x48xf32> to vector<48x48xf32>
    %cst_20 = arith.constant dense<0.000000e+00> : vector<48x32xf32>
    %19 = tpu.matmul %18, %16, %cst_20 {dimension_numbers = #tpu.dot_dimension_numbers<[1], [0], [0], [1], [0, 0, 1, 1], [], []>} : vector<48x48xf32>, vector<48x32xf32>, vector<48x32xf32> -> vector<48x32xf32>
    %c0_21 = arith.constant 0 : index
    %c0_22 = arith.constant 0 : index
    %c0_23 = arith.constant 0 : index
    %20 = vector.load %arg9[%c0_21, %c0_22, %c0_23] : memref<4x1x32xf32, #tpu.memory_space<vmem>>, vector<1x1x32xf32>
    %21 = vector.shape_cast %20 : vector<1x1x32xf32> to vector<1x32xf32>
    %22 = vector.broadcast %21 : vector<1x32xf32> to vector<48x32xf32>
    %23 = arith.addf %19, %22 : vector<48x32xf32>
    %c0_24 = arith.constant 0 : index
    %c0_25 = arith.constant 0 : index
    %c0_26 = arith.constant 0 : index
    %24 = vector.load %arg10[%c0_24, %c0_25, %c0_26] : memref<4x48x32xf32, #tpu.memory_space<vmem>>, vector<1x48x32xf32>
    %25 = vector.shape_cast %24 : vector<1x48x32xf32> to vector<48x32xf32>
    %26 = arith.mulf %23, %25 : vector<48x32xf32>
    %c0_27 = arith.constant 0 : index
    %c0_28 = arith.constant 0 : index
    %c0_29 = arith.constant 0 : index
    %27 = vector.load %arg11[%c0_27, %c0_28, %c0_29] : memref<4x48x32xf32, #tpu.memory_space<vmem>>, vector<1x48x32xf32>
    %28 = vector.shape_cast %27 : vector<1x48x32xf32> to vector<48x32xf32>
    %29 = arith.addf %26, %28 : vector<48x32xf32>
    %30 = math.tanh %29 : vector<48x32xf32>
    %c1 = arith.constant 1 : index
    %c0_30 = arith.constant 0 : index
    %c0_31 = arith.constant 0 : index
    %31 = vector.load %arg7[%c1, %c0_30, %c0_31] : memref<4x32x32xf32, #tpu.memory_space<vmem>>, vector<1x32x32xf32>
    %32 = vector.shape_cast %31 : vector<1x32x32xf32> to vector<32x32xf32>
    %cst_32 = arith.constant dense<0.000000e+00> : vector<48x32xf32>
    %33 = tpu.matmul %30, %32, %cst_32 {dimension_numbers = #tpu.dot_dimension_numbers<[1], [0], [0], [1], [0, 0, 1, 1], [], []>} : vector<48x32xf32>, vector<32x32xf32>, vector<48x32xf32> -> vector<48x32xf32>
    %c1_33 = arith.constant 1 : index
    %c0_34 = arith.constant 0 : index
    %c0_35 = arith.constant 0 : index
    %34 = vector.load %arg8[%c1_33, %c0_34, %c0_35] : memref<4x48x48xf32, #tpu.memory_space<vmem>>, vector<1x48x48xf32>
    %35 = vector.shape_cast %34 : vector<1x48x48xf32> to vector<48x48xf32>
    %cst_36 = arith.constant dense<0.000000e+00> : vector<48x32xf32>
    %36 = tpu.matmul %35, %33, %cst_36 {dimension_numbers = #tpu.dot_dimension_numbers<[1], [0], [0], [1], [0, 0, 1, 1], [], []>} : vector<48x48xf32>, vector<48x32xf32>, vector<48x32xf32> -> vector<48x32xf32>
    %c1_37 = arith.constant 1 : index
    %c0_38 = arith.constant 0 : index
    %c0_39 = arith.constant 0 : index
    %37 = vector.load %arg9[%c1_37, %c0_38, %c0_39] : memref<4x1x32xf32, #tpu.memory_space<vmem>>, vector<1x1x32xf32>
    %38 = vector.shape_cast %37 : vector<1x1x32xf32> to vector<1x32xf32>
    %39 = vector.broadcast %38 : vector<1x32xf32> to vector<48x32xf32>
    %40 = arith.addf %36, %39 : vector<48x32xf32>
    %c1_40 = arith.constant 1 : index
    %c0_41 = arith.constant 0 : index
    %c0_42 = arith.constant 0 : index
    %41 = vector.load %arg10[%c1_40, %c0_41, %c0_42] : memref<4x48x32xf32, #tpu.memory_space<vmem>>, vector<1x48x32xf32>
    %42 = vector.shape_cast %41 : vector<1x48x32xf32> to vector<48x32xf32>
    %43 = arith.mulf %40, %42 : vector<48x32xf32>
    %c1_43 = arith.constant 1 : index
    %c0_44 = arith.constant 0 : index
    %c0_45 = arith.constant 0 : index
    %44 = vector.load %arg11[%c1_43, %c0_44, %c0_45] : memref<4x48x32xf32, #tpu.memory_space<vmem>>, vector<1x48x32xf32>
    %45 = vector.shape_cast %44 : vector<1x48x32xf32> to vector<48x32xf32>
    %46 = arith.addf %43, %45 : vector<48x32xf32>
    %47 = math.tanh %46 : vector<48x32xf32>
    %48 = arith.addf %47, %13 : vector<48x32xf32>
    %c2 = arith.constant 2 : index
    %c0_46 = arith.constant 0 : index
    %c0_47 = arith.constant 0 : index
    %49 = vector.load %arg7[%c2, %c0_46, %c0_47] : memref<4x32x32xf32, #tpu.memory_space<vmem>>, vector<1x32x32xf32>
    %50 = vector.shape_cast %49 : vector<1x32x32xf32> to vector<32x32xf32>
    %cst_48 = arith.constant dense<0.000000e+00> : vector<48x32xf32>
    %51 = tpu.matmul %48, %50, %cst_48 {dimension_numbers = #tpu.dot_dimension_numbers<[1], [0], [0], [1], [0, 0, 1, 1], [], []>} : vector<48x32xf32>, vector<32x32xf32>, vector<48x32xf32> -> vector<48x32xf32>
    %c2_49 = arith.constant 2 : index
    %c0_50 = arith.constant 0 : index
    %c0_51 = arith.constant 0 : index
    %52 = vector.load %arg8[%c2_49, %c0_50, %c0_51] : memref<4x48x48xf32, #tpu.memory_space<vmem>>, vector<1x48x48xf32>
    %53 = vector.shape_cast %52 : vector<1x48x48xf32> to vector<48x48xf32>
    %cst_52 = arith.constant dense<0.000000e+00> : vector<48x32xf32>
    %54 = tpu.matmul %53, %51, %cst_52 {dimension_numbers = #tpu.dot_dimension_numbers<[1], [0], [0], [1], [0, 0, 1, 1], [], []>} : vector<48x48xf32>, vector<48x32xf32>, vector<48x32xf32> -> vector<48x32xf32>
    %c2_53 = arith.constant 2 : index
    %c0_54 = arith.constant 0 : index
    %c0_55 = arith.constant 0 : index
    %55 = vector.load %arg9[%c2_53, %c0_54, %c0_55] : memref<4x1x32xf32, #tpu.memory_space<vmem>>, vector<1x1x32xf32>
    %56 = vector.shape_cast %55 : vector<1x1x32xf32> to vector<1x32xf32>
    %57 = vector.broadcast %56 : vector<1x32xf32> to vector<48x32xf32>
    %58 = arith.addf %54, %57 : vector<48x32xf32>
    %c2_56 = arith.constant 2 : index
    %c0_57 = arith.constant 0 : index
    %c0_58 = arith.constant 0 : index
    %59 = vector.load %arg10[%c2_56, %c0_57, %c0_58] : memref<4x48x32xf32, #tpu.memory_space<vmem>>, vector<1x48x32xf32>
    %60 = vector.shape_cast %59 : vector<1x48x32xf32> to vector<48x32xf32>
    %61 = arith.mulf %58, %60 : vector<48x32xf32>
    %c2_59 = arith.constant 2 : index
    %c0_60 = arith.constant 0 : index
    %c0_61 = arith.constant 0 : index
    %62 = vector.load %arg11[%c2_59, %c0_60, %c0_61] : memref<4x48x32xf32, #tpu.memory_space<vmem>>, vector<1x48x32xf32>
    %63 = vector.shape_cast %62 : vector<1x48x32xf32> to vector<48x32xf32>
    %64 = arith.addf %61, %63 : vector<48x32xf32>
    %65 = math.tanh %64 : vector<48x32xf32>
    %c3 = arith.constant 3 : index
    %c0_62 = arith.constant 0 : index
    %c0_63 = arith.constant 0 : index
    %66 = vector.load %arg7[%c3, %c0_62, %c0_63] : memref<4x32x32xf32, #tpu.memory_space<vmem>>, vector<1x32x32xf32>
    %67 = vector.shape_cast %66 : vector<1x32x32xf32> to vector<32x32xf32>
    %cst_64 = arith.constant dense<0.000000e+00> : vector<48x32xf32>
    %68 = tpu.matmul %65, %67, %cst_64 {dimension_numbers = #tpu.dot_dimension_numbers<[1], [0], [0], [1], [0, 0, 1, 1], [], []>} : vector<48x32xf32>, vector<32x32xf32>, vector<48x32xf32> -> vector<48x32xf32>
    %c3_65 = arith.constant 3 : index
    %c0_66 = arith.constant 0 : index
    %c0_67 = arith.constant 0 : index
    %69 = vector.load %arg8[%c3_65, %c0_66, %c0_67] : memref<4x48x48xf32, #tpu.memory_space<vmem>>, vector<1x48x48xf32>
    %70 = vector.shape_cast %69 : vector<1x48x48xf32> to vector<48x48xf32>
    %cst_68 = arith.constant dense<0.000000e+00> : vector<48x32xf32>
    %71 = tpu.matmul %70, %68, %cst_68 {dimension_numbers = #tpu.dot_dimension_numbers<[1], [0], [0], [1], [0, 0, 1, 1], [], []>} : vector<48x48xf32>, vector<48x32xf32>, vector<48x32xf32> -> vector<48x32xf32>
    %c3_69 = arith.constant 3 : index
    %c0_70 = arith.constant 0 : index
    %c0_71 = arith.constant 0 : index
    %72 = vector.load %arg9[%c3_69, %c0_70, %c0_71] : memref<4x1x32xf32, #tpu.memory_space<vmem>>, vector<1x1x32xf32>
    %73 = vector.shape_cast %72 : vector<1x1x32xf32> to vector<1x32xf32>
    %74 = vector.broadcast %73 : vector<1x32xf32> to vector<48x32xf32>
    %75 = arith.addf %71, %74 : vector<48x32xf32>
    %c3_72 = arith.constant 3 : index
    %c0_73 = arith.constant 0 : index
    %c0_74 = arith.constant 0 : index
    %76 = vector.load %arg10[%c3_72, %c0_73, %c0_74] : memref<4x48x32xf32, #tpu.memory_space<vmem>>, vector<1x48x32xf32>
    %77 = vector.shape_cast %76 : vector<1x48x32xf32> to vector<48x32xf32>
    %78 = arith.mulf %75, %77 : vector<48x32xf32>
    %c3_75 = arith.constant 3 : index
    %c0_76 = arith.constant 0 : index
    %c0_77 = arith.constant 0 : index
    %79 = vector.load %arg11[%c3_75, %c0_76, %c0_77] : memref<4x48x32xf32, #tpu.memory_space<vmem>>, vector<1x48x32xf32>
    %80 = vector.shape_cast %79 : vector<1x48x32xf32> to vector<48x32xf32>
    %81 = arith.addf %78, %80 : vector<48x32xf32>
    %82 = math.tanh %81 : vector<48x32xf32>
    %83 = arith.addf %82, %48 : vector<48x32xf32>
    %c0_78 = arith.constant 0 : index
    %c0_79 = arith.constant 0 : index
    %84 = vector.load %arg12[%c0_78, %c0_79] : memref<32x16xf32, #tpu.memory_space<vmem>>, vector<32x16xf32>
    %cst_80 = arith.constant dense<0.000000e+00> : vector<48x16xf32>
    %85 = tpu.matmul %83, %84, %cst_80 {dimension_numbers = #tpu.dot_dimension_numbers<[1], [0], [0], [1], [0, 0, 1, 1], [], []>} : vector<48x32xf32>, vector<32x16xf32>, vector<48x16xf32> -> vector<48x16xf32>
    %c0_81 = arith.constant 0 : index
    %c0_82 = arith.constant 0 : index
    %86 = vector.load %arg13[%c0_81, %c0_82] : memref<48x48xf32, #tpu.memory_space<vmem>>, vector<48x48xf32>
    %cst_83 = arith.constant dense<0.000000e+00> : vector<48x16xf32>
    %87 = tpu.matmul %86, %85, %cst_83 {dimension_numbers = #tpu.dot_dimension_numbers<[1], [0], [0], [1], [0, 0, 1, 1], [], []>} : vector<48x48xf32>, vector<48x16xf32>, vector<48x16xf32> -> vector<48x16xf32>
    %c0_84 = arith.constant 0 : index
    %c0_85 = arith.constant 0 : index
    %88 = vector.load %arg14[%c0_84, %c0_85] : memref<1x16xf32, #tpu.memory_space<vmem>>, vector<1x16xf32>
    %89 = vector.broadcast %88 : vector<1x16xf32> to vector<48x16xf32>
    %90 = arith.addf %87, %89 : vector<48x16xf32>
    %91 = arith.addf %90, %1 : vector<48x16xf32>
    %c0_86 = arith.constant 0 : index
    %c0_87 = arith.constant 0 : index
    %c0_88 = arith.constant 0 : index
    %92 = vector.load %arg15[%c0_86, %c0_87, %c0_88] : memref<1x48x16xf32, #tpu.memory_space<vmem>>, vector<1x48x16xf32>
    %93 = vector.shape_cast %92 : vector<1x48x16xf32> to vector<48x16xf32>
    %94 = vector.shape_cast %91 : vector<48x16xf32> to vector<1x48x16xf32>
    tpu.vector_store %arg15[%c0_86, %c0_87, %c0_88], %94 {strides = array<i32>} : memref<1x48x16xf32, #tpu.memory_space<vmem>>, vector<1x48x16xf32>,
    return
  }
  func.func @transform_0(%arg0: i32) -> (i32, i32, i32) {
    %c0_i32 = arith.constant 0 : i32
    %c0_i32_0 = arith.constant 0 : i32
    %c0_i32_1 = arith.constant 0 : i32
    return %arg0, %c0_i32, %c0_i32_0 : i32, i32, i32
  }
  func.func @transform_1(%arg0: i32) -> (i32, i32) {
    %c0_i32 = arith.constant 0 : i32
    %c0_i32_0 = arith.constant 0 : i32
    %c0_i32_1 = arith.constant 0 : i32
    return %c0_i32, %c0_i32_0 : i32, i32
  }
  func.func @transform_2(%arg0: i32) -> (i32, i32) {
    %c0_i32 = arith.constant 0 : i32
    %c0_i32_0 = arith.constant 0 : i32
    %c0_i32_1 = arith.constant 0 : i32
    return %c0_i32, %c0_i32_0 : i32, i32
  }
  func.func @transform_3(%arg0: i32) -> (i32, i32) {
    %c0_i32 = arith.constant 0 : i32
    %c0_i32_0 = arith.constant 0 : i32
    %c0_i32_1 = arith.constant 0 : i32
    return %c0_i32, %c0_i32_0 : i32, i32
  }
  func.func @transform_4(%arg0: i32) -> (i32, i32) {
    %c0_i32 = arith.constant 0 : i32
    %c0_i32_0 = arith.constant 0 : i32
    %c0_i32_1 = arith.constant 0 : i32
    return %c0_i32, %c0_i32_0 : i32, i32
  }
  func.func @transform_5(%arg0: i32) -> (i32, i32) {
    %c0_i32 = arith.constant 0 : i32
    %c0_i32_0 = arith.constant 0 : i32
    %c0_i32_1 = arith.constant 0 : i32
    return %c0_i32, %c0_i32_0 : i32, i32
  }
  func.func @transform_6(%arg0: i32) -> (i32, i32, i32) {
    %c0_i32 = arith.constant 0 : i32
    %c0_i32_0 = arith.constant 0 : i32
    %c0_i32_1 = arith.constant 0 : i32
    %c0_i32_2 = arith.constant 0 : i32
    return %c0_i32, %c0_i32_0, %c0_i32_1 : i32, i32, i32
  }
  func.func @transform_7(%arg0: i32) -> (i32, i32, i32) {
    %c0_i32 = arith.constant 0 : i32
    %c0_i32_0 = arith.constant 0 : i32
    %c0_i32_1 = arith.constant 0 : i32
    %c0_i32_2 = arith.constant 0 : i32
    return %c0_i32, %c0_i32_0, %c0_i32_1 : i32, i32, i32
  }
  func.func @transform_8(%arg0: i32) -> (i32, i32, i32) {
    %c0_i32 = arith.constant 0 : i32
    %c0_i32_0 = arith.constant 0 : i32
    %c0_i32_1 = arith.constant 0 : i32
    %c0_i32_2 = arith.constant 0 : i32
    return %c0_i32, %c0_i32_0, %c0_i32_1 : i32, i32, i32
  }
  func.func @transform_9(%arg0: i32) -> (i32, i32, i32) {
    %c0_i32 = arith.constant 0 : i32
    %c0_i32_0 = arith.constant 0 : i32
    %c0_i32_1 = arith.constant 0 : i32
    %c0_i32_2 = arith.constant 0 : i32
    return %c0_i32, %c0_i32_0, %c0_i32_1 : i32, i32, i32
  }
  func.func @transform_10(%arg0: i32) -> (i32, i32, i32) {
    %c0_i32 = arith.constant 0 : i32
    %c0_i32_0 = arith.constant 0 : i32
    %c0_i32_1 = arith.constant 0 : i32
    %c0_i32_2 = arith.constant 0 : i32
    return %c0_i32, %c0_i32_0, %c0_i32_1 : i32, i32, i32
  }
  func.func @transform_11(%arg0: i32) -> (i32, i32) {
    %c0_i32 = arith.constant 0 : i32
    %c0_i32_0 = arith.constant 0 : i32
    %c0_i32_1 = arith.constant 0 : i32
    return %c0_i32, %c0_i32_0 : i32, i32
  }
  func.func @transform_12(%arg0: i32) -> (i32, i32) {
    %c0_i32 = arith.constant 0 : i32
    %c0_i32_0 = arith.constant 0 : i32
    %c0_i32_1 = arith.constant 0 : i32
    return %c0_i32, %c0_i32_0 : i32, i32
  }
  func.func @transform_13(%arg0: i32) -> (i32, i32) {
    %c0_i32 = arith.constant 0 : i32
    %c0_i32_0 = arith.constant 0 : i32
    %c0_i32_1 = arith.constant 0 : i32
    return %c0_i32, %c0_i32_0 : i32, i32
  }
  func.func @transform_14(%arg0: i32) -> (i32, i32, i32) {
    %c0_i32 = arith.constant 0 : i32
    %c0_i32_0 = arith.constant 0 : i32
    %c0_i32_1 = arith.constant 0 : i32
    return %arg0, %c0_i32, %c0_i32_0 : i32, i32, i32
  }
}

</mosaic_0001>

<llo_original>
// kernel: gcn_forward.1
$region0: #{gcn_forward.1}
  #allocation0 [shape = 'u32[]', space=smem, size = 0x4, offset = 0x4, fixed_abs, tag = 'smem constant byte address 0x4 - core index']
  #allocation1 [shape = 'u32[72,128]{1,0:T(1,128)}', space=vmem, size = 0x9000, scoped, tag = 'internal scratch']
  %s0 = inlined_call_operand.vmem [shape: f32[2,48,16], index: 0, kind: input, shape index: {}]
  %s1 = inlined_call_operand.vmem [shape: f32[16,32], index: 1, kind: input, shape index: {}]
  %s2 = inlined_call_operand.vmem [shape: f32[48,48], index: 2, kind: input, shape index: {}]
  %s3 = inlined_call_operand.vmem [shape: f32[1,32], index: 3, kind: input, shape index: {}]
  %s4 = inlined_call_operand.vmem [shape: f32[48,32], index: 4, kind: input, shape index: {}]
  %s5 = inlined_call_operand.vmem [shape: f32[48,32], index: 5, kind: input, shape index: {}]
  %s6 = inlined_call_operand.vmem [shape: f32[4,32,32], index: 6, kind: input, shape index: {}]
  %s7 = inlined_call_operand.vmem [shape: f32[4,48,48], index: 7, kind: input, shape index: {}]
  %s8 = inlined_call_operand.vmem [shape: f32[4,1,32], index: 8, kind: input, shape index: {}]
  %s9 = inlined_call_operand.vmem [shape: f32[4,48,32], index: 9, kind: input, shape index: {}]
  %s10 = inlined_call_operand.vmem [shape: f32[4,48,32], index: 10, kind: input, shape index: {}]
  %s11 = inlined_call_operand.vmem [shape: f32[32,16], index: 11, kind: input, shape index: {}]
  %s12 = inlined_call_operand.vmem [shape: f32[48,48], index: 12, kind: input, shape index: {}]
  %s13 = inlined_call_operand.vmem [shape: f32[1,16], index: 13, kind: input, shape index: {}]
  %s14 = inlined_call_operand.vmem [shape: f32[2,48,16], index: 14, kind: output, shape index: {}]
  %s15 = sld [smem:[#allocation0]]
  $region89: #{gcn_forward.1} parent=0
    _
  %s17 = ssub.s32 1, %s15
  %s18 = scalar_select 0, %s17, %s15
  loop: start=0, step=1, limit=4
  $region2: #{gcn_forward.1} parent=0 // loop_pre_header
    _
  $region3: #{gcn_forward.1} parent=0 // loop_header
    %s20 = sphi 0, %s24
    %p21 = scmp.ge.s32.totalorder %s20, 4
    %s30 = sphi 0, %s32
    %s33 = sphi 0, %s30
    %s34 = sphi 0, %s33
    %s50 = sphi 0, %s34
    %s54 = sphi 0, %s54
    %s56 = sphi 0, %s54
    %s57 = sphi 0, %s56
    %s71 = sphi 0, %s57
    %s75 = sphi 0, %s75
    %s77 = sphi 0, %s75
    %s78 = sphi 0, %s77
    %s92 = sphi 0, %s78
    %s96 = sphi 0, %s96
    %s98 = sphi 0, %s96
    %s99 = sphi 0, %s98
    %s113 = sphi 0, %s99
    %s117 = sphi 0, %s117
    %s119 = sphi 0, %s117
    %s120 = sphi 0, %s119
    %s134 = sphi 0, %s120
    %s138 = sphi 0, %s138
    %s140 = sphi 0, %s138
    %s141 = sphi 0, %s140
    %s155 = sphi 0, %s141
    %s159 = sphi 0, %s159
    %s161 = sphi 0, %s159
    %s162 = sphi 0, %s161
    %s176 = sphi 0, %s162
    %s180 = sphi 0, %s180
    %s182 = sphi 0, %s180
    %s183 = sphi 0, %s182
    %s197 = sphi 0, %s183
    %s201 = sphi 0, %s201
    %s203 = sphi 0, %s201
    %s204 = sphi 0, %s203
    %s218 = sphi 0, %s204
    %s222 = sphi 0, %s222
    %s224 = sphi 0, %s222
    %s225 = sphi 0, %s224
    %s239 = sphi 0, %s225
    %s243 = sphi 0, %s243
    %s245 = sphi 0, %s243
    %s246 = sphi 0, %s245
    %s260 = sphi 0, %s246
    %s264 = sphi 0, %s264
    %s266 = sphi 0, %s264
    %s267 = sphi 0, %s266
    %s281 = sphi 0, %s267
    %s285 = sphi 0, %s285
    %s287 = sphi 0, %s285
    %s288 = sphi 0, %s287
    %s302 = sphi 0, %s288
    %s306 = sphi 0, %s306
    %s308 = sphi 0, %s306
    %s309 = sphi 0, %s308
    %s323 = sphi 0, %s309
    %s329 = sphi 0, %s331
    %s332 = sphi 0, %s329
    %s333 = sphi 0, %s332
    %s349 = sphi 0, %s333
  $region4: #{gcn_forward.1} parent=0 // loop_header_branch
    %23 = sbr.rel (%p21) target = $region8
  $region5: #{gcn_forward.1} parent=0 // loop_body
    %s25 = ssub.s32 %s20, 1
    %s26 = ssub.s32 %s20, 2
    %s27 = sadd.s32 %s20, 1
    %s28 = ssub.s32 %s20, %s27
    %p29 = scmp.eq.s32.totalorder %s28, 0
    %s31 = sadd.s32 %s30, 1
    %s32 = scalar_select %p29, %s30, %s31
    %p35 = pneg %p29
    %p36 = scmp.eq.s32.totalorder %s20, 1
    %p37 = por %p35, %p36
    %p38 = scmp.ne.s32.totalorder %s30, %s33
    %p39 = scmp.eq.s32.totalorder %s20, 0
    %p40 = por %p38, %p39
    %p41 = scmp.ne.s32.totalorder %s30, %s33
    %p42 = scmp.eq.s32.totalorder %s25, 1
    %p43 = por %p41, %p42
    %p44 = scmp.ne.s32.totalorder %s33, %s34
    %p45 = scmp.eq.s32.totalorder %s25, 0
    %p46 = por %p44, %p45
    %p47 = scmp.ne.s32.totalorder %s33, %s34
    %p48 = scmp.eq.s32.totalorder %s26, 1
    %p49 = por %p47, %p48
    %p51 = scmp.ne.s32.totalorder %s34, %s50
    %p52 = scmp.eq.s32.totalorder %s26, 0
    %p53 = por %p51, %p52
    %s55 = sadd.s32 %s54, 1
    %p58 = scmp.eq.s32.totalorder %s20, 1
    %p59 = scmp.ne.s32.totalorder %s54, %s56
    %p60 = scmp.eq.s32.totalorder %s20, 0
    %p61 = por %p59, %p60
    %p62 = scmp.ne.s32.totalorder %s54, %s56
    %p63 = scmp.eq.s32.totalorder %s25, 1
    %p64 = por %p62, %p63
    %p65 = scmp.ne.s32.totalorder %s56, %s57
    %p66 = scmp.eq.s32.totalorder %s25, 0
    %p67 = por %p65, %p66
    %p68 = scmp.ne.s32.totalorder %s56, %s57
    %p69 = scmp.eq.s32.totalorder %s26, 1
    %p70 = por %p68, %p69
    %p72 = scmp.ne.s32.totalorder %s57, %s71
    %p73 = scmp.eq.s32.totalorder %s26, 0
    %p74 = por %p72, %p73
    %s76 = sadd.s32 %s75, 1
    %p79 = scmp.eq.s32.totalorder %s20, 1
    %p80 = scmp.ne.s32.totalorder %s75, %s77
    %p81 = scmp.eq.s32.totalorder %s20, 0
    %p82 = por %p80, %p81
    %p83 = scmp.ne.s32.totalorder %s75, %s77
    %p84 = scmp.eq.s32.totalorder %s25, 1
    %p85 = por %p83, %p84
    %p86 = scmp.ne.s32.totalorder %s77, %s78
    %p87 = scmp.eq.s32.totalorder %s25, 0
    %p88 = por %p86, %p87
    %p89 = scmp.ne.s32.totalorder %s77, %s78
    %p90 = scmp.eq.s32.totalorder %s26, 1
    %p91 = por %p89, %p90
    %p93 = scmp.ne.s32.totalorder %s78, %s92
    %p94 = scmp.eq.s32.totalorder %s26, 0
    %p95 = por %p93, %p94
    %s97 = sadd.s32 %s96, 1
    %p100 = scmp.eq.s32.totalorder %s20, 1
    %p101 = scmp.ne.s32.totalorder %s96, %s98
    %p102 = scmp.eq.s32.totalorder %s20, 0
    %p103 = por %p101, %p102
    %p104 = scmp.ne.s32.totalorder %s96, %s98
    %p105 = scmp.eq.s32.totalorder %s25, 1
    %p106 = por %p104, %p105
    %p107 = scmp.ne.s32.totalorder %s98, %s99
    %p108 = scmp.eq.s32.totalorder %s25, 0
    %p109 = por %p107, %p108
    %p110 = scmp.ne.s32.totalorder %s98, %s99
    %p111 = scmp.eq.s32.totalorder %s26, 1
    %p112 = por %p110, %p111
    %p114 = scmp.ne.s32.totalorder %s99, %s113
    %p115 = scmp.eq.s32.totalorder %s26, 0
    %p116 = por %p114, %p115
    %s118 = sadd.s32 %s117, 1
    %p121 = scmp.eq.s32.totalorder %s20, 1
    %p122 = scmp.ne.s32.totalorder %s117, %s119
    %p123 = scmp.eq.s32.totalorder %s20, 0
    %p124 = por %p122, %p123
    %p125 = scmp.ne.s32.totalorder %s117, %s119
    %p126 = scmp.eq.s32.totalorder %s25, 1
    %p127 = por %p125, %p126
    %p128 = scmp.ne.s32.totalorder %s119, %s120
    %p129 = scmp.eq.s32.totalorder %s25, 0
    %p130 = por %p128, %p129
    %p131 = scmp.ne.s32.totalorder %s119, %s120
    %p132 = scmp.eq.s32.totalorder %s26, 1
    %p133 = por %p131, %p132
    %p135 = scmp.ne.s32.totalorder %s120, %s134
    %p136 = scmp.eq.s32.totalorder %s26, 0
    %p137 = por %p135, %p136
    %s139 = sadd.s32 %s138, 1
    %p142 = scmp.eq.s32.totalorder %s20, 1
    %p143 = scmp.ne.s32.totalorder %s138, %s140
    %p144 = scmp.eq.s32.totalorder %s20, 0
    %p145 = por %p143, %p144
    %p146 = scmp.ne.s32.totalorder %s138, %s140
    %p147 = scmp.eq.s32.totalorder %s25, 1
    %p148 = por %p146, %p147
    %p149 = scmp.ne.s32.totalorder %s140, %s141
    %p150 = scmp.eq.s32.totalorder %s25, 0
    %p151 = por %p149, %p150
    %p152 = scmp.ne.s32.totalorder %s140, %s141
    %p153 = scmp.eq.s32.totalorder %s26, 1
    %p154 = por %p152, %p153
    %p156 = scmp.ne.s32.totalorder %s141, %s155
    %p157 = scmp.eq.s32.totalorder %s26, 0
    %p158 = por %p156, %p157
    %s160 = sadd.s32 %s159, 1
    %p163 = scmp.eq.s32.totalorder %s20, 1
    %p164 = scmp.ne.s32.totalorder %s159, %s161
    %p165 = scmp.eq.s32.totalorder %s20, 0
    %p166 = por %p164, %p165
    %p167 = scmp.ne.s32.totalorder %s159, %s161
    %p168 = scmp.eq.s32.totalorder %s25, 1
    %p169 = por %p167, %p168
    %p170 = scmp.ne.s32.totalorder %s161, %s162
    %p171 = scmp.eq.s32.totalorder %s25, 0
    %p172 = por %p170, %p171
    %p173 = scmp.ne.s32.totalorder %s161, %s162
    %p174 = scmp.eq.s32.totalorder %s26, 1
    %p175 = por %p173, %p174
    %p177 = scmp.ne.s32.totalorder %s162, %s176
    %p178 = scmp.eq.s32.totalorder %s26, 0
    %p179 = por %p177, %p178
    %s181 = sadd.s32 %s180, 1
    %p184 = scmp.eq.s32.totalorder %s20, 1
    %p185 = scmp.ne.s32.totalorder %s180, %s182
    %p186 = scmp.eq.s32.totalorder %s20, 0
    %p187 = por %p185, %p186
    %p188 = scmp.ne.s32.totalorder %s180, %s182
    %p189 = scmp.eq.s32.totalorder %s25, 1
    %p190 = por %p188, %p189
    %p191 = scmp.ne.s32.totalorder %s182, %s183
    %p192 = scmp.eq.s32.totalorder %s25, 0
    %p193 = por %p191, %p192
    %p194 = scmp.ne.s32.totalorder %s182, %s183
    %p195 = scmp.eq.s32.totalorder %s26, 1
    %p196 = por %p194, %p195
    %p198 = scmp.ne.s32.totalorder %s183, %s197
    %p199 = scmp.eq.s32.totalorder %s26, 0
    %p200 = por %p198, %p199
    %s202 = sadd.s32 %s201, 1
    %p205 = scmp.eq.s32.totalorder %s20, 1
    %p206 = scmp.ne.s32.totalorder %s201, %s203
    %p207 = scmp.eq.s32.totalorder %s20, 0
    %p208 = por %p206, %p207
    %p209 = scmp.ne.s32.totalorder %s201, %s203
    %p210 = scmp.eq.s32.totalorder %s25, 1
    %p211 = por %p209, %p210
    %p212 = scmp.ne.s32.totalorder %s203, %s204
    %p213 = scmp.eq.s32.totalorder %s25, 0
    %p214 = por %p212, %p213
    %p215 = scmp.ne.s32.totalorder %s203, %s204
    %p216 = scmp.eq.s32.totalorder %s26, 1
    %p217 = por %p215, %p216
    %p219 = scmp.ne.s32.totalorder %s204, %s218
    %p220 = scmp.eq.s32.totalorder %s26, 0
    %p221 = por %p219, %p220
    %s223 = sadd.s32 %s222, 1
    %p226 = scmp.eq.s32.totalorder %s20, 1
    %p227 = scmp.ne.s32.totalorder %s222, %s224
    %p228 = scmp.eq.s32.totalorder %s20, 0
    %p229 = por %p227, %p228
    %p230 = scmp.ne.s32.totalorder %s222, %s224
    %p231 = scmp.eq.s32.totalorder %s25, 1
    %p232 = por %p230, %p231
    %p233 = scmp.ne.s32.totalorder %s224, %s225
    %p234 = scmp.eq.s32.totalorder %s25, 0
    %p235 = por %p233, %p234
    %p236 = scmp.ne.s32.totalorder %s224, %s225
    %p237 = scmp.eq.s32.totalorder %s26, 1
    %p238 = por %p236, %p237
    %p240 = scmp.ne.s32.totalorder %s225, %s239
    %p241 = scmp.eq.s32.totalorder %s26, 0
    %p242 = por %p240, %p241
    %s244 = sadd.s32 %s243, 1
    %p247 = scmp.eq.s32.totalorder %s20, 1
    %p248 = scmp.ne.s32.totalorder %s243, %s245
    %p249 = scmp.eq.s32.totalorder %s20, 0
    %p250 = por %p248, %p249
    %p251 = scmp.ne.s32.totalorder %s243, %s245
    %p252 = scmp.eq.s32.totalorder %s25, 1
    %p253 = por %p251, %p252
    %p254 = scmp.ne.s32.totalorder %s245, %s246
    %p255 = scmp.eq.s32.totalorder %s25, 0
    %p256 = por %p254, %p255
    %p257 = scmp.ne.s32.totalorder %s245, %s246
    %p258 = scmp.eq.s32.totalorder %s26, 1
    %p259 = por %p257, %p258
    %p261 = scmp.ne.s32.totalorder %s246, %s260
    %p262 = scmp.eq.s32.totalorder %s26, 0
    %p263 = por %p261, %p262
    %s265 = sadd.s32 %s264, 1
    %p268 = scmp.eq.s32.totalorder %s20, 1
    %p269 = scmp.ne.s32.totalorder %s264, %s266
    %p270 = scmp.eq.s32.totalorder %s20, 0
    %p271 = por %p269, %p270
    %p272 = scmp.ne.s32.totalorder %s264, %s266
    %p273 = scmp.eq.s32.totalorder %s25, 1
    %p274 = por %p272, %p273
    %p275 = scmp.ne.s32.totalorder %s266, %s267
    %p276 = scmp.eq.s32.totalorder %s25, 0
    %p277 = por %p275, %p276
    %p278 = scmp.ne.s32.totalorder %s266, %s267
    %p279 = scmp.eq.s32.totalorder %s26, 1
    %p280 = por %p278, %p279
    %p282 = scmp.ne.s32.totalorder %s267, %s281
    %p283 = scmp.eq.s32.totalorder %s26, 0
    %p284 = por %p282, %p283
    %s286 = sadd.s32 %s285, 1
    %p289 = scmp.eq.s32.totalorder %s20, 1
    %p290 = scmp.ne.s32.totalorder %s285, %s287
    %p291 = scmp.eq.s32.totalorder %s20, 0
    %p292 = por %p290, %p291
    %p293 = scmp.ne.s32.totalorder %s285, %s287
    %p294 = scmp.eq.s32.totalorder %s25, 1
    %p295 = por %p293, %p294
    %p296 = scmp.ne.s32.totalorder %s287, %s288
    %p297 = scmp.eq.s32.totalorder %s25, 0
    %p298 = por %p296, %p297
    %p299 = scmp.ne.s32.totalorder %s287, %s288
    %p300 = scmp.eq.s32.totalorder %s26, 1
    %p301 = por %p299, %p300
    %p303 = scmp.ne.s32.totalorder %s288, %s302
    %p304 = scmp.eq.s32.totalorder %s26, 0
    %p305 = por %p303, %p304
    %s307 = sadd.s32 %s306, 1
    %p310 = scmp.eq.s32.totalorder %s20, 1
    %p311 = scmp.ne.s32.totalorder %s306, %s308
    %p312 = scmp.eq.s32.totalorder %s20, 0
    %p313 = por %p311, %p312
    %p314 = scmp.ne.s32.totalorder %s306, %s308
    %p315 = scmp.eq.s32.totalorder %s25, 1
    %p316 = por %p314, %p315
    %p317 = scmp.ne.s32.totalorder %s308, %s309
    %p318 = scmp.eq.s32.totalorder %s25, 0
    %p319 = por %p317, %p318
    %p320 = scmp.ne.s32.totalorder %s308, %s309
    %p321 = scmp.eq.s32.totalorder %s26, 1
    %p322 = por %p320, %p321
    %p324 = scmp.ne.s32.totalorder %s309, %s323
    %p325 = scmp.eq.s32.totalorder %s26, 0
    %p326 = por %p324, %p325
    %s327 = ssub.s32 %s20, %s27
    %p328 = scmp.eq.s32.totalorder %s327, 0
    %s330 = sadd.s32 %s329, 1
    %s331 = scalar_select %p328, %s329, %s330
    %p334 = pneg %p328
    %p335 = scmp.eq.s32.totalorder %s20, 1
    %p336 = por %p334, %p335
    %p337 = scmp.ne.s32.totalorder %s329, %s332
    %p338 = scmp.eq.s32.totalorder %s20, 0
    %p339 = por %p337, %p338
    %p340 = scmp.ne.s32.totalorder %s329, %s332
    %p341 = scmp.eq.s32.totalorder %s25, 1
    %p342 = por %p340, %p341
    %p343 = scmp.ne.s32.totalorder %s332, %s333
    %p344 = scmp.eq.s32.totalorder %s25, 0
    %p345 = por %p343, %p344
    %p346 = scmp.ne.s32.totalorder %s332, %s333
    %p347 = scmp.eq.s32.totalorder %s26, 1
    %p348 = por %p346, %p347
    %p350 = scmp.ne.s32.totalorder %s333, %s349
    %p351 = scmp.eq.s32.totalorder %s26, 0
    %p352 = por %p350, %p351
    %p353 = scmp.le.s32.totalorder 1, %s20
    %p354 = scmp.lt.s32.totalorder %s20, 3
    %p355 = pnand %p353, %p354
    %p356 = pneg %p355
    // Predicated region
    $region9: #{gcn_forward.1} parent=5 // pred_check
      _
    $region10: #{gcn_forward.1} parent=5 // pred_check_branch
      %358 = sbr.rel (%p355) target = $region12
    $region11: #{gcn_forward.1} parent=5 // pred_region
      %s359 = ssub.s32 %s20, 1
      // Predicated region
      $region13: #{gcn_forward.1} parent=11 // pred_check
        %p360 = pneg %p67
      $region14: #{gcn_forward.1} parent=11 // pred_check_branch
        %362 = sbr.rel (%p360) target = $region16
      $region15: #{gcn_forward.1} parent=11 // pred_region
        _
      $region16: #{gcn_forward.1} parent=11 // pred_fallthru
        _
      // Predicated region
      $region17: #{gcn_forward.1} parent=11 // pred_check
        %p363 = pneg %p88
      $region18: #{gcn_forward.1} parent=11 // pred_check_branch
        %365 = sbr.rel (%p363) target = $region20
      $region19: #{gcn_forward.1} parent=11 // pred_region
        _
      $region20: #{gcn_forward.1} parent=11 // pred_fallthru
        _
      // Predicated region
      $region21: #{gcn_forward.1} parent=11 // pred_check
        %p366 = pneg %p109
      $region22: #{gcn_forward.1} parent=11 // pred_check_branch
        %368 = sbr.rel (%p366) target = $region24
      $region23: #{gcn_forward.1} parent=11 // pred_region
        _
      $region24: #{gcn_forward.1} parent=11 // pred_fallthru
        _
      // Predicated region
      $region25: #{gcn_forward.1} parent=11 // pred_check
        %p369 = pneg %p130
      $region26: #{gcn_forward.1} parent=11 // pred_check_branch
        %371 = sbr.rel (%p369) target = $region28
      $region27: #{gcn_forward.1} parent=11 // pred_region
        _
      $region28: #{gcn_forward.1} parent=11 // pred_fallthru
        _
      // Predicated region
      $region29: #{gcn_forward.1} parent=11 // pred_check
        %p372 = pneg %p151
      $region30: #{gcn_forward.1} parent=11 // pred_check_branch
        %374 = sbr.rel (%p372) target = $region32
      $region31: #{gcn_forward.1} parent=11 // pred_region
        _
      $region32: #{gcn_forward.1} parent=11 // pred_fallthru
        _
      // Predicated region
      $region33: #{gcn_forward.1} parent=11 // pred_check
        %p375 = pneg %p172
      $region34: #{gcn_forward.1} parent=11 // pred_check_branch
        %377 = sbr.rel (%p375) target = $region36
      $region35: #{gcn_forward.1} parent=11 // pred_region
        _
      $region36: #{gcn_forward.1} parent=11 // pred_fallthru
        _
      // Predicated region
      $region37: #{gcn_forward.1} parent=11 // pred_check
        %p378 = pneg %p193
      $region38: #{gcn_forward.1} parent=11 // pred_check_branch
        %380 = sbr.rel (%p378) target = $region40
      $region39: #{gcn_forward.1} parent=11 // pred_region
        _
      $region40: #{gcn_forward.1} parent=11 // pred_fallthru
        _
      // Predicated region
      $region41: #{gcn_forward.1} parent=11 // pred_check
        %p381 = pneg %p214
      $region42: #{gcn_forward.1} parent=11 // pred_check_branch
        %383 = sbr.rel (%p381) target = $region44
      $region43: #{gcn_forward.1} parent=11 // pred_region
        _
      $region44: #{gcn_forward.1} parent=11 // pred_fallthru
        _
      // Predicated region
      $region45: #{gcn_forward.1} parent=11 // pred_check
        %p384 = pneg %p235
      $region46: #{gcn_forward.1} parent=11 // pred_check_branch
        %386 = sbr.rel (%p384) target = $region48
      $region47: #{gcn_forward.1} parent=11 // pred_region
        _
      $region48: #{gcn_forward.1} parent=11 // pred_fallthru
        _
      // Predicated region
      $region49: #{gcn_forward.1} parent=11 // pred_check
        %p387 = pneg %p256
      $region50: #{gcn_forward.1} parent=11 // pred_check_branch
        %389 = sbr.rel (%p387) target = $region52
      $region51: #{gcn_forward.1} parent=11 // pred_region
        _
      $region52: #{gcn_forward.1} parent=11 // pred_fallthru
        _
      // Predicated region
      $region53: #{gcn_forward.1} parent=11 // pred_check
        %p390 = pneg %p277
      $region54: #{gcn_forward.1} parent=11 // pred_check_branch
        %392 = sbr.rel (%p390) target = $region56
      $region55: #{gcn_forward.1} parent=11 // pred_region
        _
      $region56: #{gcn_forward.1} parent=11 // pred_fallthru
        _
      // Predicated region
      $region57: #{gcn_forward.1} parent=11 // pred_check
        %p393 = pneg %p298
      $region58: #{gcn_forward.1} parent=11 // pred_check_branch
        %395 = sbr.rel (%p393) target = $region60
      $region59: #{gcn_forward.1} parent=11 // pred_region
        _
      $region60: #{gcn_forward.1} parent=11 // pred_fallthru
        _
      // Predicated region
      $region61: #{gcn_forward.1} parent=11 // pred_check
        %p396 = pneg %p319
      $region62: #{gcn_forward.1} parent=11 // pred_check_branch
        %398 = sbr.rel (%p396) target = $region64
      $region63: #{gcn_forward.1} parent=11 // pred_region
        _
      $region64: #{gcn_forward.1} parent=11 // pred_fallthru
        _
    $region12: #{gcn_forward.1} parent=5 // pred_fallthru
      _
    %p399 = scmp.lt.s32.totalorder %s20, 2
    // Predicated region
    $region65: #{gcn_forward.1} parent=5 // pred_check
      %p400 = pneg %p399
    $region66: #{gcn_forward.1} parent=5 // pred_check_branch
      %402 = sbr.rel (%p400) target = $region68
    $region67: #{gcn_forward.1} parent=5 // pred_region
      // Predicated region
      $region69: #{gcn_forward.1} parent=67 // pred_check
        %p403 = pneg %p40
      $region70: #{gcn_forward.1} parent=67 // pred_check_branch
        %405 = sbr.rel (%p403) target = $region72
      $region71: #{gcn_forward.1} parent=67 // pred_region
        %p406 = scmp.lt.s32.totalorder %s20, 1
        %s407 = scalar_select %p406, %s20, 1
        %s408 = smul.addr %s407, 6
        %s409 = smul.addr %s408, 8
        %s410 = scalar_lea.vmem %s0, %s409
      $region72: #{gcn_forward.1} parent=67 // pred_fallthru
        _
    $region68: #{gcn_forward.1} parent=5 // pred_fallthru
      _
    %p411 = scmp.le.s32.totalorder 1, %s20
    %p412 = scmp.lt.s32.totalorder %s20, 3
    %p413 = pnand %p411, %p412
    %p414 = pneg %p413
    // Predicated region
    $region73: #{gcn_forward.1} parent=5 // pred_check
      _
    $region74: #{gcn_forward.1} parent=5 // pred_check_branch
      %416 = sbr.rel (%p413) target = $region76
    $region75: #{gcn_forward.1} parent=5 // pred_region
      %s417 = ssub.s32 %s20, 1
      %p418 = scmp.lt.s32.totalorder %s25, 1
      %s419 = scalar_select %p418, %s25, 1
      %s420 = smul.addr %s419, 6
      %s421 = smul.addr %s420, 8
      %s422 = scalar_lea.vmem %s0, %s421
      %p423 = pneg %p46
      %p424 = pneg %p43
      %p425 = pneg %p67
      %p426 = pneg %p64
      %p427 = pneg %p88
      %p428 = pneg %p85
      %p429 = pneg %p109
      %p430 = pneg %p106
      %p431 = pneg %p130
      %p432 = pneg %p127
      %p433 = pneg %p151
      %p434 = pneg %p148
      %p435 = pneg %p172
      %p436 = pneg %p169
      %p437 = pneg %p193
      %p438 = pneg %p190
      %p439 = pneg %p214
      %p440 = pneg %p211
      %p441 = pneg %p235
      %p442 = pneg %p232
      %p443 = pneg %p256
      %p444 = pneg %p253
      %p445 = pneg %p277
      %p446 = pneg %p274
      %p447 = pneg %p298
      %p448 = pneg %p295
      %p449 = pneg %p319
      %p450 = pneg %p316
      %p451 = pneg %p345
      %p452 = pneg %p342
      %p453 = scmp.lt.s32.totalorder %s25, 1
      %s454 = scalar_select %p453, %s25, 1
      %s455 = smul.addr %s454, 6
      %s456 = smul.addr %s455, 8
      %s457 = scalar_lea.vmem %s14, %s456
      %p458 = scmp.lt.s32.totalorder %s25, 1
      %s459 = scalar_select %p458, %s25, 1
      %s460 = smul.addr %s459, 6
      %s461 = smul.addr %s460, 8
      %s462 = scalar_lea.vmem %s0, %s461
      %p463 = scmp.lt.s32.totalorder %s25, 1
      %s464 = scalar_select %p463, %s25, 1
      %s465 = smul.addr %s464, 6
      %s466 = smul.addr %s465, 8
      %s467 = scalar_lea.vmem %s14, %s466
      %v468 = vld [vmem:[%s462] sm:$0xff]
      %v469 = vld [vmem:[%s462 + $0x8] sm:$0xff]
      %v470 = vld [vmem:[%s462 + $0x10] sm:$0xff]
      %v471 = vld [vmem:[%s462 + $0x18] sm:$0xff]
      %v472 = vld [vmem:[%s462 + $0x20] sm:$0xff]
      %v473 = vld [vmem:[%s462 + $0x28] sm:$0xff]
      %v474 = vld [vmem:[%s2] sm:$0xff]
      %v475 = vld [vmem:[%s2 + $0x8] sm:$0xff]
      %v476 = vld [vmem:[%s2 + $0x10] sm:$0xff]
      %v477 = vld [vmem:[%s2 + $0x18] sm:$0xff]
      %v478 = vld [vmem:[%s2 + $0x20] sm:$0xff]
      %v479 = vld [vmem:[%s2 + $0x28] sm:$0xff]
      %vm480 = vcmask 392192
      %v482 = vsel %vm480, %v474, 0
      %v485 = vsel %vm480, %v475, 0
      %v488 = vsel %vm480, %v476, 0
      %v491 = vsel %vm480, %v477, 0
      %v494 = vsel %vm480, %v478, 0
      %v497 = vsel %vm480, %v479, 0
      %499 = vmatpush.msra.mxu0 0.0
      %500 = vmatpush.msra.mxu0 0.0
      %501 = vmatpush.msra.mxu0 0.0
      %502 = vmatpush.msra.mxu0 0.0
      %503 = vmatpush.msra.mxu0 0.0
      %504 = vmatpush.msra.mxu0 0.0
      %505 = vmatpush.msra.mxu0 0.0
      %506 = vmatpush.msra.mxu0 0.0
      %507 = vmatpush.msra.mxu0 0.0
      %508 = vmatpush.msra.mxu0 0.0
      %509 = vmatpush.msra.mxu0 %v473
      %510 = vmatpush.msra.mxu0 %v472
      %511 = vmatpush.msra.mxu0 %v471
      %512 = vmatpush.msra.mxu0 %v470
      %513 = vmatpush.msra.mxu0 %v469
      %514 = vmatpush.msra.mxu0 %v468
      %515 = vmatmul.f32.gmra.mxu0 %v482
      %v516 = vpop.f32.mrf.mxu0
      %v517 = vadd.f32 0.0, %v516
      %518 = vmatmul.f32.gmra.mxu0 %v485
      %v519 = vpop.f32.mrf.mxu0
      %v520 = vadd.f32 0.0, %v519
      %521 = vmatmul.f32.gmra.mxu0 %v488
      %v522 = vpop.f32.mrf.mxu0
      %v523 = vadd.f32 0.0, %v522
      %524 = vmatmul.f32.gmra.mxu0 %v491
      %v525 = vpop.f32.mrf.mxu0
      %v526 = vadd.f32 0.0, %v525
      %527 = vmatmul.f32.gmra.mxu0 %v494
      %v528 = vpop.f32.mrf.mxu0
      %v529 = vadd.f32 0.0, %v528
      %530 = vmatmul.f32.gmra.mxu0 %v497
      %v531 = vpop.f32.mrf.mxu0
      %v532 = vadd.f32 0.0, %v531
      %533 = vdwg.mxu0
      %v534 = vld [vmem:[%s1] sm:$0xff]
      %v535 = vld [vmem:[%s1 + $0x8] sm:$0xff]
      %v536 = vld [vmem:[%s3] sm:$0x1]
      %v538 = vperm.slane %v536, 0
      %vm540 = vcmask 130048
      %v542 = vsel %vm540, %v517, 0
      %v545 = vsel %vm540, %v520, 0
      %v548 = vsel %vm540, %v523, 0
      %v551 = vsel %vm540, %v526, 0
      %v554 = vsel %vm540, %v529, 0
      %v557 = vsel %vm540, %v532, 0
      %559 = vmatpush.msra.mxu0 0.0
      %560 = vmatpush.msra.mxu0 0.0
      %561 = vmatpush.msra.mxu0 0.0
      %562 = vmatpush.msra.mxu0 0.0
      %563 = vmatpush.msra.mxu0 0.0
      %564 = vmatpush.msra.mxu0 0.0
      %565 = vmatpush.msra.mxu0 0.0
      %566 = vmatpush.msra.mxu0 0.0
      %567 = vmatpush.msra.mxu0 0.0
      %568 = vmatpush.msra.mxu0 0.0
      %569 = vmatpush.msra.mxu0 0.0
      %570 = vmatpush.msra.mxu0 0.0
      %571 = vmatpush.msra.mxu0 0.0
      %572 = vmatpush.msra.mxu0 0.0
      %573 = vmatpush.msra.mxu0 %v535
      %574 = vmatpush.msra.mxu0 %v534
      %575 = vmatmul.f32.gmra.mxu0 %v542
      %v576 = vpop.f32.mrf.mxu0
      %v577 = vadd.f32 %v538, %v576
      %578 = vmatmul.f32.gmra.mxu0 %v545
      %v579 = vpop.f32.mrf.mxu0
      %v580 = vadd.f32 %v538, %v579
      %581 = vmatmul.f32.gmra.mxu0 %v548
      %v582 = vpop.f32.mrf.mxu0
      %v583 = vadd.f32 %v538, %v582
      %584 = vmatmul.f32.gmra.mxu0 %v551
      %v585 = vpop.f32.mrf.mxu0
      %v586 = vadd.f32 %v538, %v585
      %587 = vmatmul.f32.gmra.mxu0 %v554
      %v588 = vpop.f32.mrf.mxu0
      %v589 = vadd.f32 %v538, %v588
      %590 = vmatmul.f32.gmra.mxu0 %v557
      %v591 = vpop.f32.mrf.mxu0
      %v592 = vadd.f32 %v538, %v591
      %593 = vdwg.mxu0
      %v594 = vld [vmem:[%s4] sm:$0xff]
      %v595 = vld [vmem:[%s4 + $0x8] sm:$0xff]
      %v596 = vld [vmem:[%s4 + $0x10] sm:$0xff]
      %v597 = vld [vmem:[%s4 + $0x18] sm:$0xff]
      %v598 = vld [vmem:[%s4 + $0x20] sm:$0xff]
      %v599 = vld [vmem:[%s4 + $0x28] sm:$0xff]
      %v600 = vmul.f32 %v577, %v594
      %v601 = vmul.f32 %v580, %v595
      %v602 = vmul.f32 %v583, %v596
      %v603 = vmul.f32 %v586, %v597
      %v604 = vmul.f32 %v589, %v598
      %v605 = vmul.f32 %v592, %v599
      %v606 = vld [vmem:[%s5] sm:$0xff]
      %v607 = vld [vmem:[%s5 + $0x8] sm:$0xff]
      %v608 = vld [vmem:[%s5 + $0x10] sm:$0xff]
      %v609 = vld [vmem:[%s5 + $0x18] sm:$0xff]
      %v610 = vld [vmem:[%s5 + $0x20] sm:$0xff]
      %v611 = vld [vmem:[%s5 + $0x28] sm:$0xff]
      %v612 = vadd.f32 %v600, %v606
      %v613 = vadd.f32 %v601, %v607
      %v614 = vadd.f32 %v602, %v608
      %v615 = vadd.f32 %v603, %v609
      %v616 = vadd.f32 %v604, %v610
      %v617 = vadd.f32 %v605, %v611
      %v618 = vtanh.pop %v612
      %v619 = vtanh.pop %v613
      %v620 = vtanh.pop %v614
      %v621 = vtanh.pop %v615
      %v622 = vtanh.pop %v616
      %v623 = vtanh.pop %v617
      %v624 = vld [vmem:[%s6] sm:$0xff]
      %v625 = vld [vmem:[%s6 + $0x8] sm:$0xff]
      %v626 = vld [vmem:[%s6 + $0x10] sm:$0xff]
      %v627 = vld [vmem:[%s6 + $0x18] sm:$0xff]
      %vm628 = vcmask 261120
      %v630 = vsel %vm628, %v618, 0
      %v633 = vsel %vm628, %v619, 0
      %v636 = vsel %vm628, %v620, 0
      %v639 = vsel %vm628, %v621, 0
      %v642 = vsel %vm628, %v622, 0
      %v645 = vsel %vm628, %v623, 0
      %647 = vmatpush.msra.mxu0 0.0
      %648 = vmatpush.msra.mxu0 0.0
      %649 = vmatpush.msra.mxu0 0.0
      %650 = vmatpush.msra.mxu0 0.0
      %651 = vmatpush.msra.mxu0 0.0
      %652 = vmatpush.msra.mxu0 0.0
      %653 = vmatpush.msra.mxu0 0.0
      %654 = vmatpush.msra.mxu0 0.0
      %655 = vmatpush.msra.mxu0 0.0
      %656 = vmatpush.msra.mxu0 0.0
      %657 = vmatpush.msra.mxu0 0.0
      %658 = vmatpush.msra.mxu0 0.0
      %659 = vmatpush.msra.mxu0 %v627
      %660 = vmatpush.msra.mxu0 %v626
      %661 = vmatpush.msra.mxu0 %v625
      %662 = vmatpush.msra.mxu0 %v624
      %663 = vmatmul.f32.gmra.mxu0 %v630
      %v664 = vpop.f32.mrf.mxu0
      %v665 = vadd.f32 0.0, %v664
      %666 = vmatmul.f32.gmra.mxu0 %v633
      %v667 = vpop.f32.mrf.mxu0
      %v668 = vadd.f32 0.0, %v667
      %669 = vmatmul.f32.gmra.mxu0 %v636
      %v670 = vpop.f32.mrf.mxu0
      %v671 = vadd.f32 0.0, %v670
      %672 = vmatmul.f32.gmra.mxu0 %v639
      %v673 = vpop.f32.mrf.mxu0
      %v674 = vadd.f32 0.0, %v673
      %675 = vmatmul.f32.gmra.mxu0 %v642
      %v676 = vpop.f32.mrf.mxu0
      %v677 = vadd.f32 0.0, %v676
      %678 = vmatmul.f32.gmra.mxu0 %v645
      %v679 = vpop.f32.mrf.mxu0
      %v680 = vadd.f32 0.0, %v679
      %681 = vdwg.mxu0
      %v682 = vld [vmem:[%s7] sm:$0xff]
      %v683 = vld [vmem:[%s7 + $0x8] sm:$0xff]
      %v684 = vld [vmem:[%s7 + $0x10] sm:$0xff]
      %v685 = vld [vmem:[%s7 + $0x18] sm:$0xff]
      %v686 = vld [vmem:[%s7 + $0x20] sm:$0xff]
      %v687 = vld [vmem:[%s7 + $0x28] sm:$0xff]
      %v688 = vld [vmem:[%s8] sm:$0x1]
      %v690 = vperm.slane %v688, 0
      %v693 = vsel %vm480, %v682, 0
      %v696 = vsel %vm480, %v683, 0
      %v699 = vsel %vm480, %v684, 0
      %v702 = vsel %vm480, %v685, 0
      %v705 = vsel %vm480, %v686, 0
      %v708 = vsel %vm480, %v687, 0
      %710 = vmatpush.msra.mxu0 0.0
      %711 = vmatpush.msra.mxu0 0.0
      %712 = vmatpush.msra.mxu0 0.0
      %713 = vmatpush.msra.mxu0 0.0
      %714 = vmatpush.msra.mxu0 0.0
      %715 = vmatpush.msra.mxu0 0.0
      %716 = vmatpush.msra.mxu0 0.0
      %717 = vmatpush.msra.mxu0 0.0
      %718 = vmatpush.msra.mxu0 0.0
      %719 = vmatpush.msra.mxu0 0.0
      %720 = vmatpush.msra.mxu0 %v680
      %721 = vmatpush.msra.mxu0 %v677
      %722 = vmatpush.msra.mxu0 %v674
      %723 = vmatpush.msra.mxu0 %v671
      %724 = vmatpush.msra.mxu0 %v668
      %725 = vmatpush.msra.mxu0 %v665
      %726 = vmatmul.f32.gmra.mxu0 %v693
      %v727 = vpop.f32.mrf.mxu0
      %v728 = vadd.f32 %v690, %v727
      %729 = vmatmul.f32.gmra.mxu0 %v696
      %v730 = vpop.f32.mrf.mxu0
      %v731 = vadd.f32 %v690, %v730
      %732 = vmatmul.f32.gmra.mxu0 %v699
      %v733 = vpop.f32.mrf.mxu0
      %v734 = vadd.f32 %v690, %v733
      %735 = vmatmul.f32.gmra.mxu0 %v702
      %v736 = vpop.f32.mrf.mxu0
      %v737 = vadd.f32 %v690, %v736
      %738 = vmatmul.f32.gmra.mxu0 %v705
      %v739 = vpop.f32.mrf.mxu0
      %v740 = vadd.f32 %v690, %v739
      %741 = vmatmul.f32.gmra.mxu0 %v708
      %v742 = vpop.f32.mrf.mxu0
      %v743 = vadd.f32 %v690, %v742
      %744 = vdwg.mxu0
      %v745 = vld [vmem:[%s9] sm:$0xff]
      %v746 = vld [vmem:[%s9 + $0x8] sm:$0xff]
      %v747 = vld [vmem:[%s9 + $0x10] sm:$0xff]
      %v748 = vld [vmem:[%s9 + $0x18] sm:$0xff]
      %v749 = vld [vmem:[%s9 + $0x20] sm:$0xff]
      %v750 = vld [vmem:[%s9 + $0x28] sm:$0xff]
      %v751 = vmul.f32 %v728, %v745
      %v752 = vmul.f32 %v731, %v746
      %v753 = vmul.f32 %v734, %v747
      %v754 = vmul.f32 %v737, %v748
      %v755 = vmul.f32 %v740, %v749
      %v756 = vmul.f32 %v743, %v750
      %v757 = vld [vmem:[%s10] sm:$0xff]
      %v758 = vld [vmem:[%s10 + $0x8] sm:$0xff]
      %v759 = vld [vmem:[%s10 + $0x10] sm:$0xff]
      %v760 = vld [vmem:[%s10 + $0x18] sm:$0xff]
      %v761 = vld [vmem:[%s10 + $0x20] sm:$0xff]
      %v762 = vld [vmem:[%s10 + $0x28] sm:$0xff]
      %v763 = vadd.f32 %v751, %v757
      %v764 = vadd.f32 %v752, %v758
      %v765 = vadd.f32 %v753, %v759
      %v766 = vadd.f32 %v754, %v760
      %v767 = vadd.f32 %v755, %v761
      %v768 = vadd.f32 %v756, %v762
      %v769 = vtanh.pop %v763
      %v770 = vtanh.pop %v764
      %v771 = vtanh.pop %v765
      %v772 = vtanh.pop %v766
      %v773 = vtanh.pop %v767
      %v774 = vtanh.pop %v768
      %s775 = scalar_lea.vmem %s6, 32
      %v776 = vld [vmem:[%s775] sm:$0xff]
      %v777 = vld [vmem:[%s775 + $0x8] sm:$0xff]
      %v778 = vld [vmem:[%s775 + $0x10] sm:$0xff]
      %v779 = vld [vmem:[%s775 + $0x18] sm:$0xff]
      %v781 = vsel %vm628, %v769, 0
      %v784 = vsel %vm628, %v770, 0
      %v787 = vsel %vm628, %v771, 0
      %v790 = vsel %vm628, %v772, 0
      %v793 = vsel %vm628, %v773, 0
      %v796 = vsel %vm628, %v774, 0
      %798 = vmatpush.msra.mxu0 0.0
      %799 = vmatpush.msra.mxu0 0.0
      %800 = vmatpush.msra.mxu0 0.0
      %801 = vmatpush.msra.mxu0 0.0
      %802 = vmatpush.msra.mxu0 0.0
      %803 = vmatpush.msra.mxu0 0.0
      %804 = vmatpush.msra.mxu0 0.0
      %805 = vmatpush.msra.mxu0 0.0
      %806 = vmatpush.msra.mxu0 0.0
      %807 = vmatpush.msra.mxu0 0.0
      %808 = vmatpush.msra.mxu0 0.0
      %809 = vmatpush.msra.mxu0 0.0
      %810 = vmatpush.msra.mxu0 %v779
      %811 = vmatpush.msra.mxu0 %v778
      %812 = vmatpush.msra.mxu0 %v777
      %813 = vmatpush.msra.mxu0 %v776
      %814 = vmatmul.f32.gmra.mxu0 %v781
      %v815 = vpop.f32.mrf.mxu0
      %v816 = vadd.f32 0.0, %v815
      %817 = vmatmul.f32.gmra.mxu0 %v784
      %v818 = vpop.f32.mrf.mxu0
      %v819 = vadd.f32 0.0, %v818
      %820 = vmatmul.f32.gmra.mxu0 %v787
      %v821 = vpop.f32.mrf.mxu0
      %v822 = vadd.f32 0.0, %v821
      %823 = vmatmul.f32.gmra.mxu0 %v790
      %v824 = vpop.f32.mrf.mxu0
      %v825 = vadd.f32 0.0, %v824
      %826 = vmatmul.f32.gmra.mxu0 %v793
      %v827 = vpop.f32.mrf.mxu0
      %v828 = vadd.f32 0.0, %v827
      %829 = vmatmul.f32.gmra.mxu0 %v796
      %v830 = vpop.f32.mrf.mxu0
      %v831 = vadd.f32 0.0, %v830
      %832 = vdwg.mxu0
      %s833 = scalar_lea.vmem %s7, 48
      %v834 = vld [vmem:[%s833] sm:$0xff]
      %v835 = vld [vmem:[%s833 + $0x8] sm:$0xff]
      %v836 = vld [vmem:[%s833 + $0x10] sm:$0xff]
      %v837 = vld [vmem:[%s833 + $0x18] sm:$0xff]
      %v838 = vld [vmem:[%s833 + $0x20] sm:$0xff]
      %v839 = vld [vmem:[%s833 + $0x28] sm:$0xff]
      %s840 = scalar_lea.vmem %s8, 1
      %v841 = vld [vmem:[%s840] sm:$0x1]
      %v843 = vperm.slane %v841, 0
      %v846 = vsel %vm480, %v834, 0
      %v849 = vsel %vm480, %v835, 0
      %v852 = vsel %vm480, %v836, 0
      %v855 = vsel %vm480, %v837, 0
      %v858 = vsel %vm480, %v838, 0
      %v861 = vsel %vm480, %v839, 0
      %863 = vmatpush.msra.mxu0 0.0
      %864 = vmatpush.msra.mxu0 0.0
      %865 = vmatpush.msra.mxu0 0.0
      %866 = vmatpush.msra.mxu0 0.0
      %867 = vmatpush.msra.mxu0 0.0
      %868 = vmatpush.msra.mxu0 0.0
      %869 = vmatpush.msra.mxu0 0.0
      %870 = vmatpush.msra.mxu0 0.0
      %871 = vmatpush.msra.mxu0 0.0
      %872 = vmatpush.msra.mxu0 0.0
      %873 = vmatpush.msra.mxu0 %v831
      %874 = vmatpush.msra.mxu0 %v828
      %875 = vmatpush.msra.mxu0 %v825
      %876 = vmatpush.msra.mxu0 %v822
      %877 = vmatpush.msra.mxu0 %v819
      %878 = vmatpush.msra.mxu0 %v816
      %879 = vmatmul.f32.gmra.mxu0 %v846
      %v880 = vpop.f32.mrf.mxu0
      %v881 = vadd.f32 %v843, %v880
      %882 = vmatmul.f32.gmra.mxu0 %v849
      %v883 = vpop.f32.mrf.mxu0
      %v884 = vadd.f32 %v843, %v883
      %885 = vmatmul.f32.gmra.mxu0 %v852
      %v886 = vpop.f32.mrf.mxu0
      %v887 = vadd.f32 %v843, %v886
      %888 = vmatmul.f32.gmra.mxu0 %v855
      %v889 = vpop.f32.mrf.mxu0
      %v890 = vadd.f32 %v843, %v889
      %891 = vmatmul.f32.gmra.mxu0 %v858
      %v892 = vpop.f32.mrf.mxu0
      %v893 = vadd.f32 %v843, %v892
      %894 = vmatmul.f32.gmra.mxu0 %v861
      %v895 = vpop.f32.mrf.mxu0
      %v896 = vadd.f32 %v843, %v895
      %897 = vdwg.mxu0
      %s898 = scalar_lea.vmem %s9, 48
      %v899 = vld [vmem:[%s898] sm:$0xff]
      %v900 = vld [vmem:[%s898 + $0x8] sm:$0xff]
      %v901 = vld [vmem:[%s898 + $0x10] sm:$0xff]
      %v902 = vld [vmem:[%s898 + $0x18] sm:$0xff]
      %v903 = vld [vmem:[%s898 + $0x20] sm:$0xff]
      %v904 = vld [vmem:[%s898 + $0x28] sm:$0xff]
      %v905 = vmul.f32 %v881, %v899
      %v906 = vmul.f32 %v884, %v900
      %v907 = vmul.f32 %v887, %v901
      %v908 = vmul.f32 %v890, %v902
      %v909 = vmul.f32 %v893, %v903
      %v910 = vmul.f32 %v896, %v904
      %s911 = scalar_lea.vmem %s10, 48
      %v912 = vld [vmem:[%s911] sm:$0xff]
      %v913 = vld [vmem:[%s911 + $0x8] sm:$0xff]
      %v914 = vld [vmem:[%s911 + $0x10] sm:$0xff]
      %v915 = vld [vmem:[%s911 + $0x18] sm:$0xff]
      %v916 = vld [vmem:[%s911 + $0x20] sm:$0xff]
      %v917 = vld [vmem:[%s911 + $0x28] sm:$0xff]
      %v918 = vadd.f32 %v905, %v912
      %v919 = vadd.f32 %v906, %v913
      %v920 = vadd.f32 %v907, %v914
      %v921 = vadd.f32 %v908, %v915
      %v922 = vadd.f32 %v909, %v916
      %v923 = vadd.f32 %v910, %v917
      %v924 = vtanh.pop %v918
      %v925 = vtanh.pop %v919
      %v926 = vtanh.pop %v920
      %v927 = vtanh.pop %v921
      %v928 = vtanh.pop %v922
      %v929 = vtanh.pop %v923
      %v930 = vadd.f32 %v924, %v618
      %v931 = vadd.f32 %v925, %v619
      %v932 = vadd.f32 %v926, %v620
      %v933 = vadd.f32 %v927, %v621
      %v934 = vadd.f32 %v928, %v622
      %v935 = vadd.f32 %v929, %v623
      %s936 = scalar_lea.vmem %s6, 64
      %v937 = vld [vmem:[%s936] sm:$0xff]
      %v938 = vld [vmem:[%s936 + $0x8] sm:$0xff]
      %v939 = vld [vmem:[%s936 + $0x10] sm:$0xff]
      %v940 = vld [vmem:[%s936 + $0x18] sm:$0xff]
      %v942 = vsel %vm628, %v930, 0
      %v945 = vsel %vm628, %v931, 0
      %v948 = vsel %vm628, %v932, 0
      %v951 = vsel %vm628, %v933, 0
      %v954 = vsel %vm628, %v934, 0
      %v957 = vsel %vm628, %v935, 0
      %959 = vmatpush.msra.mxu0 0.0
      %960 = vmatpush.msra.mxu0 0.0
      %961 = vmatpush.msra.mxu0 0.0
      %962 = vmatpush.msra.mxu0 0.0
      %963 = vmatpush.msra.mxu0 0.0
      %964 = vmatpush.msra.mxu0 0.0
      %965 = vmatpush.msra.mxu0 0.0
      %966 = vmatpush.msra.mxu0 0.0
      %967 = vmatpush.msra.mxu0 0.0
      %968 = vmatpush.msra.mxu0 0.0
      %969 = vmatpush.msra.mxu0 0.0
      %970 = vmatpush.msra.mxu0 0.0
      %971 = vmatpush.msra.mxu0 %v940
      %972 = vmatpush.msra.mxu0 %v939
      %973 = vmatpush.msra.mxu0 %v938
      %974 = vmatpush.msra.mxu0 %v937
      %975 = vmatmul.f32.gmra.mxu0 %v942
      %v976 = vpop.f32.mrf.mxu0
      %v977 = vadd.f32 0.0, %v976
      %978 = vmatmul.f32.gmra.mxu0 %v945
      %v979 = vpop.f32.mrf.mxu0
      %v980 = vadd.f32 0.0, %v979
      %981 = vmatmul.f32.gmra.mxu0 %v948
      %v982 = vpop.f32.mrf.mxu0
      %v983 = vadd.f32 0.0, %v982
      %984 = vmatmul.f32.gmra.mxu0 %v951
      %v985 = vpop.f32.mrf.mxu0
      %v986 = vadd.f32 0.0, %v985
      %987 = vmatmul.f32.gmra.mxu0 %v954
      %v988 = vpop.f32.mrf.mxu0
      %v989 = vadd.f32 0.0, %v988
      %990 = vmatmul.f32.gmra.mxu0 %v957
      %v991 = vpop.f32.mrf.mxu0
      %v992 = vadd.f32 0.0, %v991
      %993 = vdwg.mxu0
      %s994 = scalar_lea.vmem %s7, 96
      %v995 = vld [vmem:[%s994] sm:$0xff]
      %v996 = vld [vmem:[%s994 + $0x8] sm:$0xff]
      %v997 = vld [vmem:[%s994 + $0x10] sm:$0xff]
      %v998 = vld [vmem:[%s994 + $0x18] sm:$0xff]
      %v999 = vld [vmem:[%s994 + $0x20] sm:$0xff]
      %v1000 = vld [vmem:[%s994 + $0x28] sm:$0xff]
      %s1001 = scalar_lea.vmem %s8, 2
      %v1002 = vld [vmem:[%s1001] sm:$0x1]
      %v1004 = vperm.slane %v1002, 0
      %v1007 = vsel %vm480, %v995, 0
      %v1010 = vsel %vm480, %v996, 0
      %v1013 = vsel %vm480, %v997, 0
      %v1016 = vsel %vm480, %v998, 0
      %v1019 = vsel %vm480, %v999, 0
      %v1022 = vsel %vm480, %v1000, 0
      %1024 = vmatpush.msra.mxu0 0.0
      %1025 = vmatpush.msra.mxu0 0.0
      %1026 = vmatpush.msra.mxu0 0.0
      %1027 = vmatpush.msra.mxu0 0.0
      %1028 = vmatpush.msra.mxu0 0.0
      %1029 = vmatpush.msra.mxu0 0.0
      %1030 = vmatpush.msra.mxu0 0.0
      %1031 = vmatpush.msra.mxu0 0.0
      %1032 = vmatpush.msra.mxu0 0.0
      %1033 = vmatpush.msra.mxu0 0.0
      %1034 = vmatpush.msra.mxu0 %v992
      %1035 = vmatpush.msra.mxu0 %v989
      %1036 = vmatpush.msra.mxu0 %v986
      %1037 = vmatpush.msra.mxu0 %v983
      %1038 = vmatpush.msra.mxu0 %v980
      %1039 = vmatpush.msra.mxu0 %v977
      %1040 = vmatmul.f32.gmra.mxu0 %v1007
      %v1041 = vpop.f32.mrf.mxu0
      %v1042 = vadd.f32 %v1004, %v1041
      %1043 = vmatmul.f32.gmra.mxu0 %v1010
      %v1044 = vpop.f32.mrf.mxu0
      %v1045 = vadd.f32 %v1004, %v1044
      %1046 = vmatmul.f32.gmra.mxu0 %v1013
      %v1047 = vpop.f32.mrf.mxu0
      %v1048 = vadd.f32 %v1004, %v1047
      %1049 = vmatmul.f32.gmra.mxu0 %v1016
      %v1050 = vpop.f32.mrf.mxu0
      %v1051 = vadd.f32 %v1004, %v1050
      %1052 = vmatmul.f32.gmra.mxu0 %v1019
      %v1053 = vpop.f32.mrf.mxu0
      %v1054 = vadd.f32 %v1004, %v1053
      %1055 = vmatmul.f32.gmra.mxu0 %v1022
      %v1056 = vpop.f32.mrf.mxu0
      %v1057 = vadd.f32 %v1004, %v1056
      %1058 = vdwg.mxu0
      %s1059 = scalar_lea.vmem %s9, 96
      %v1060 = vld [vmem:[%s1059] sm:$0xff]
      %v1061 = vld [vmem:[%s1059 + $0x8] sm:$0xff]
      %v1062 = vld [vmem:[%s1059 + $0x10] sm:$0xff]
      %v1063 = vld [vmem:[%s1059 + $0x18] sm:$0xff]
      %v1064 = vld [vmem:[%s1059 + $0x20] sm:$0xff]
      %v1065 = vld [vmem:[%s1059 + $0x28] sm:$0xff]
      %v1066 = vmul.f32 %v1042, %v1060
      %v1067 = vmul.f32 %v1045, %v1061
      %v1068 = vmul.f32 %v1048, %v1062
      %v1069 = vmul.f32 %v1051, %v1063
      %v1070 = vmul.f32 %v1054, %v1064
      %v1071 = vmul.f32 %v1057, %v1065
      %s1072 = scalar_lea.vmem %s10, 96
      %v1073 = vld [vmem:[%s1072] sm:$0xff]
      %v1074 = vld [vmem:[%s1072 + $0x8] sm:$0xff]
      %v1075 = vld [vmem:[%s1072 + $0x10] sm:$0xff]
      %v1076 = vld [vmem:[%s1072 + $0x18] sm:$0xff]
      %v1077 = vld [vmem:[%s1072 + $0x20] sm:$0xff]
      %v1078 = vld [vmem:[%s1072 + $0x28] sm:$0xff]
      %v1079 = vadd.f32 %v1066, %v1073
      %v1080 = vadd.f32 %v1067, %v1074
      %v1081 = vadd.f32 %v1068, %v1075
      %v1082 = vadd.f32 %v1069, %v1076
      %v1083 = vadd.f32 %v1070, %v1077
      %v1084 = vadd.f32 %v1071, %v1078
      %v1085 = vtanh.pop %v1079
      %v1086 = vtanh.pop %v1080
      %v1087 = vtanh.pop %v1081
      %v1088 = vtanh.pop %v1082
      %v1089 = vtanh.pop %v1083
      %v1090 = vtanh.pop %v1084
      %s1091 = scalar_lea.vmem %s6, 96
      %v1092 = vld [vmem:[%s1091] sm:$0xff]
      %v1093 = vld [vmem:[%s1091 + $0x8] sm:$0xff]
      %v1094 = vld [vmem:[%s1091 + $0x10] sm:$0xff]
      %v1095 = vld [vmem:[%s1091 + $0x18] sm:$0xff]
      %v1097 = vsel %vm628, %v1085, 0
      %v1100 = vsel %vm628, %v1086, 0
      %v1103 = vsel %vm628, %v1087, 0
      %v1106 = vsel %vm628, %v1088, 0
      %v1109 = vsel %vm628, %v1089, 0
      %v1112 = vsel %vm628, %v1090, 0
      %1114 = vmatpush.msra.mxu0 0.0
      %1115 = vmatpush.msra.mxu0 0.0
      %1116 = vmatpush.msra.mxu0 0.0
      %1117 = vmatpush.msra.mxu0 0.0
      %1118 = vmatpush.msra.mxu0 0.0
      %1119 = vmatpush.msra.mxu0 0.0
      %1120 = vmatpush.msra.mxu0 0.0
      %1121 = vmatpush.msra.mxu0 0.0
      %1122 = vmatpush.msra.mxu0 0.0
      %1123 = vmatpush.msra.mxu0 0.0
      %1124 = vmatpush.msra.mxu0 0.0
      %1125 = vmatpush.msra.mxu0 0.0
      %1126 = vmatpush.msra.mxu0 %v1095
      %1127 = vmatpush.msra.mxu0 %v1094
      %1128 = vmatpush.msra.mxu0 %v1093
      %1129 = vmatpush.msra.mxu0 %v1092
      %1130 = vmatmul.f32.gmra.mxu0 %v1097
      %v1131 = vpop.f32.mrf.mxu0
      %v1132 = vadd.f32 0.0, %v1131
      %1133 = vmatmul.f32.gmra.mxu0 %v1100
      %v1134 = vpop.f32.mrf.mxu0
      %v1135 = vadd.f32 0.0, %v1134
      %1136 = vmatmul.f32.gmra.mxu0 %v1103
      %v1137 = vpop.f32.mrf.mxu0
      %v1138 = vadd.f32 0.0, %v1137
      %1139 = vmatmul.f32.gmra.mxu0 %v1106
      %v1140 = vpop.f32.mrf.mxu0
      %v1141 = vadd.f32 0.0, %v1140
      %1142 = vmatmul.f32.gmra.mxu0 %v1109
      %v1143 = vpop.f32.mrf.mxu0
      %v1144 = vadd.f32 0.0, %v1143
      %1145 = vmatmul.f32.gmra.mxu0 %v1112
      %v1146 = vpop.f32.mrf.mxu0
      %v1147 = vadd.f32 0.0, %v1146
      %1148 = vdwg.mxu0
      %s1149 = scalar_lea.vmem %s7, 144
      %v1150 = vld [vmem:[%s1149] sm:$0xff]
      %v1151 = vld [vmem:[%s1149 + $0x8] sm:$0xff]
      %v1152 = vld [vmem:[%s1149 + $0x10] sm:$0xff]
      %v1153 = vld [vmem:[%s1149 + $0x18] sm:$0xff]
      %v1154 = vld [vmem:[%s1149 + $0x20] sm:$0xff]
      %v1155 = vld [vmem:[%s1149 + $0x28] sm:$0xff]
      %s1156 = scalar_lea.vmem %s8, 3
      %v1157 = vld [vmem:[%s1156] sm:$0x1]
      %v1159 = vperm.slane %v1157, 0
      %v1162 = vsel %vm480, %v1150, 0
      %v1165 = vsel %vm480, %v1151, 0
      %v1168 = vsel %vm480, %v1152, 0
      %v1171 = vsel %vm480, %v1153, 0
      %v1174 = vsel %vm480, %v1154, 0
      %v1177 = vsel %vm480, %v1155, 0
      %1179 = vmatpush.msra.mxu0 0.0
      %1180 = vmatpush.msra.mxu0 0.0
      %1181 = vmatpush.msra.mxu0 0.0
      %1182 = vmatpush.msra.mxu0 0.0
      %1183 = vmatpush.msra.mxu0 0.0
      %1184 = vmatpush.msra.mxu0 0.0
      %1185 = vmatpush.msra.mxu0 0.0
      %1186 = vmatpush.msra.mxu0 0.0
      %1187 = vmatpush.msra.mxu0 0.0
      %1188 = vmatpush.msra.mxu0 0.0
      %1189 = vmatpush.msra.mxu0 %v1147
      %1190 = vmatpush.msra.mxu0 %v1144
      %1191 = vmatpush.msra.mxu0 %v1141
      %1192 = vmatpush.msra.mxu0 %v1138
      %1193 = vmatpush.msra.mxu0 %v1135
      %1194 = vmatpush.msra.mxu0 %v1132
      %1195 = vmatmul.f32.gmra.mxu0 %v1162
      %v1196 = vpop.f32.mrf.mxu0
      %v1197 = vadd.f32 %v1159, %v1196
      %1198 = vmatmul.f32.gmra.mxu0 %v1165
      %v1199 = vpop.f32.mrf.mxu0
      %v1200 = vadd.f32 %v1159, %v1199
      %1201 = vmatmul.f32.gmra.mxu0 %v1168
      %v1202 = vpop.f32.mrf.mxu0
      %v1203 = vadd.f32 %v1159, %v1202
      %1204 = vmatmul.f32.gmra.mxu0 %v1171
      %v1205 = vpop.f32.mrf.mxu0
      %v1206 = vadd.f32 %v1159, %v1205
      %1207 = vmatmul.f32.gmra.mxu0 %v1174
      %v1208 = vpop.f32.mrf.mxu0
      %v1209 = vadd.f32 %v1159, %v1208
      %1210 = vmatmul.f32.gmra.mxu0 %v1177
      %v1211 = vpop.f32.mrf.mxu0
      %v1212 = vadd.f32 %v1159, %v1211
      %1213 = vdwg.mxu0
      %s1214 = scalar_lea.vmem %s9, 144
      %v1215 = vld [vmem:[%s1214] sm:$0xff]
      %v1216 = vld [vmem:[%s1214 + $0x8] sm:$0xff]
      %v1217 = vld [vmem:[%s1214 + $0x10] sm:$0xff]
      %v1218 = vld [vmem:[%s1214 + $0x18] sm:$0xff]
      %v1219 = vld [vmem:[%s1214 + $0x20] sm:$0xff]
      %v1220 = vld [vmem:[%s1214 + $0x28] sm:$0xff]
      %v1221 = vmul.f32 %v1197, %v1215
      %v1222 = vmul.f32 %v1200, %v1216
      %v1223 = vmul.f32 %v1203, %v1217
      %v1224 = vmul.f32 %v1206, %v1218
      %v1225 = vmul.f32 %v1209, %v1219
      %v1226 = vmul.f32 %v1212, %v1220
      %s1227 = scalar_lea.vmem %s10, 144
      %v1228 = vld [vmem:[%s1227] sm:$0xff]
      %v1229 = vld [vmem:[%s1227 + $0x8] sm:$0xff]
      %v1230 = vld [vmem:[%s1227 + $0x10] sm:$0xff]
      %v1231 = vld [vmem:[%s1227 + $0x18] sm:$0xff]
      %v1232 = vld [vmem:[%s1227 + $0x20] sm:$0xff]
      %v1233 = vld [vmem:[%s1227 + $0x28] sm:$0xff]
      %v1234 = vadd.f32 %v1221, %v1228
      %v1235 = vadd.f32 %v1222, %v1229
      %v1236 = vadd.f32 %v1223, %v1230
      %v1237 = vadd.f32 %v1224, %v1231
      %v1238 = vadd.f32 %v1225, %v1232
      %v1239 = vadd.f32 %v1226, %v1233
      %v1240 = vtanh.pop %v1234
      %v1241 = vtanh.pop %v1235
      %v1242 = vtanh.pop %v1236
      %v1243 = vtanh.pop %v1237
      %v1244 = vtanh.pop %v1238
      %v1245 = vtanh.pop %v1239
      %v1246 = vadd.f32 %v1240, %v930
      %v1247 = vadd.f32 %v1241, %v931
      %v1248 = vadd.f32 %v1242, %v932
      %v1249 = vadd.f32 %v1243, %v933
      %v1250 = vadd.f32 %v1244, %v934
      %v1251 = vadd.f32 %v1245, %v935
      %v1252 = vld [vmem:[%s11] sm:$0xff]
      %v1253 = vld [vmem:[%s11 + $0x8] sm:$0xff]
      %v1254 = vld [vmem:[%s11 + $0x10] sm:$0xff]
      %v1255 = vld [vmem:[%s11 + $0x18] sm:$0xff]
      %v1257 = vsel %vm628, %v1246, 0
      %v1260 = vsel %vm628, %v1247, 0
      %v1263 = vsel %vm628, %v1248, 0
      %v1266 = vsel %vm628, %v1249, 0
      %v1269 = vsel %vm628, %v1250, 0
      %v1272 = vsel %vm628, %v1251, 0
      %1274 = vmatpush.msra.mxu0 0.0
      %1275 = vmatpush.msra.mxu0 0.0
      %1276 = vmatpush.msra.mxu0 0.0
      %1277 = vmatpush.msra.mxu0 0.0
      %1278 = vmatpush.msra.mxu0 0.0
      %1279 = vmatpush.msra.mxu0 0.0
      %1280 = vmatpush.msra.mxu0 0.0
      %1281 = vmatpush.msra.mxu0 0.0
      %1282 = vmatpush.msra.mxu0 0.0
      %1283 = vmatpush.msra.mxu0 0.0
      %1284 = vmatpush.msra.mxu0 0.0
      %1285 = vmatpush.msra.mxu0 0.0
      %1286 = vmatpush.msra.mxu0 %v1255
      %1287 = vmatpush.msra.mxu0 %v1254
      %1288 = vmatpush.msra.mxu0 %v1253
      %1289 = vmatpush.msra.mxu0 %v1252
      %1290 = vmatmul.f32.gmra.mxu0 %v1257
      %v1291 = vpop.f32.mrf.mxu0
      %v1292 = vadd.f32 0.0, %v1291
      %1293 = vmatmul.f32.gmra.mxu0 %v1260
      %v1294 = vpop.f32.mrf.mxu0
      %v1295 = vadd.f32 0.0, %v1294
      %1296 = vmatmul.f32.gmra.mxu0 %v1263
      %v1297 = vpop.f32.mrf.mxu0
      %v1298 = vadd.f32 0.0, %v1297
      %1299 = vmatmul.f32.gmra.mxu0 %v1266
      %v1300 = vpop.f32.mrf.mxu0
      %v1301 = vadd.f32 0.0, %v1300
      %1302 = vmatmul.f32.gmra.mxu0 %v1269
      %v1303 = vpop.f32.mrf.mxu0
      %v1304 = vadd.f32 0.0, %v1303
      %1305 = vmatmul.f32.gmra.mxu0 %v1272
      %v1306 = vpop.f32.mrf.mxu0
      %v1307 = vadd.f32 0.0, %v1306
      %1308 = vdwg.mxu0
      %v1309 = vld [vmem:[%s12] sm:$0xff]
      %v1310 = vld [vmem:[%s12 + $0x8] sm:$0xff]
      %v1311 = vld [vmem:[%s12 + $0x10] sm:$0xff]
      %v1312 = vld [vmem:[%s12 + $0x18] sm:$0xff]
      %v1313 = vld [vmem:[%s12 + $0x20] sm:$0xff]
      %v1314 = vld [vmem:[%s12 + $0x28] sm:$0xff]
      %v1315 = vld [vmem:[%s13] sm:$0x1]
      %v1317 = vperm.slane %v1315, 0
      %v1320 = vsel %vm480, %v1309, 0
      %v1323 = vsel %vm480, %v1310, 0
      %v1326 = vsel %vm480, %v1311, 0
      %v1329 = vsel %vm480, %v1312, 0
      %v1332 = vsel %vm480, %v1313, 0
      %v1335 = vsel %vm480, %v1314, 0
      %1337 = vmatpush.msra.mxu0 0.0
      %1338 = vmatpush.msra.mxu0 0.0
      %1339 = vmatpush.msra.mxu0 0.0
      %1340 = vmatpush.msra.mxu0 0.0
      %1341 = vmatpush.msra.mxu0 0.0
      %1342 = vmatpush.msra.mxu0 0.0
      %1343 = vmatpush.msra.mxu0 0.0
      %1344 = vmatpush.msra.mxu0 0.0
      %1345 = vmatpush.msra.mxu0 0.0
      %1346 = vmatpush.msra.mxu0 0.0
      %1347 = vmatpush.msra.mxu0 %v1307
      %1348 = vmatpush.msra.mxu0 %v1304
      %1349 = vmatpush.msra.mxu0 %v1301
      %1350 = vmatpush.msra.mxu0 %v1298
      %1351 = vmatpush.msra.mxu0 %v1295
      %1352 = vmatpush.msra.mxu0 %v1292
      %1353 = vmatmul.f32.gmra.mxu0 %v1320
      %v1354 = vpop.f32.mrf.mxu0
      %v1355 = vadd.f32 %v1317, %v1354
      %1356 = vmatmul.f32.gmra.mxu0 %v1323
      %v1357 = vpop.f32.mrf.mxu0
      %v1358 = vadd.f32 %v1317, %v1357
      %1359 = vmatmul.f32.gmra.mxu0 %v1326
      %v1360 = vpop.f32.mrf.mxu0
      %v1361 = vadd.f32 %v1317, %v1360
      %1362 = vmatmul.f32.gmra.mxu0 %v1329
      %v1363 = vpop.f32.mrf.mxu0
      %v1364 = vadd.f32 %v1317, %v1363
      %1365 = vmatmul.f32.gmra.mxu0 %v1332
      %v1366 = vpop.f32.mrf.mxu0
      %v1367 = vadd.f32 %v1317, %v1366
      %1368 = vmatmul.f32.gmra.mxu0 %v1335
      %v1369 = vpop.f32.mrf.mxu0
      %v1370 = vadd.f32 %v1317, %v1369
      %1371 = vdwg.mxu0
      %v1372 = vadd.f32 %v1355, %v468
      %v1373 = vadd.f32 %v1358, %v469
      %v1374 = vadd.f32 %v1361, %v470
      %v1375 = vadd.f32 %v1364, %v471
      %v1376 = vadd.f32 %v1367, %v472
      %v1377 = vadd.f32 %v1370, %v473
      %1378 = vst.msk [vmem:[%s467] sm:$0xff] %vm540, %v1372
      %1379 = vst.msk [vmem:[%s467 + $0x8] sm:$0xff] %vm540, %v1373
      %1380 = vst.msk [vmem:[%s467 + $0x10] sm:$0xff] %vm540, %v1374
      %1381 = vst.msk [vmem:[%s467 + $0x18] sm:$0xff] %vm540, %v1375
      %1382 = vst.msk [vmem:[%s467 + $0x20] sm:$0xff] %vm540, %v1376
      %1383 = vst.msk [vmem:[%s467 + $0x28] sm:$0xff] %vm540, %v1377
      %p1384 = scmp.lt.s32.totalorder %s25, 1
      %s1385 = scalar_select %p1384, %s25, 1
      %s1386 = smul.addr %s1385, 6
      %s1387 = smul.addr %s1386, 8
      %s1388 = scalar_lea.vmem %s14, %s1387
      // Predicated region
      $region77: #{gcn_forward.1} parent=75 // pred_check
        %p1389 = pneg %p342
      $region78: #{gcn_forward.1} parent=75 // pred_check_branch
        %1391 = sbr.rel (%p1389) target = $region80
      $region79: #{gcn_forward.1} parent=75 // pred_region
        _
      $region80: #{gcn_forward.1} parent=75 // pred_fallthru
        _
    $region76: #{gcn_forward.1} parent=5 // pred_fallthru
      _
    %p1392 = scmp.le.s32.totalorder 2, %s20
    // Predicated region
    $region81: #{gcn_forward.1} parent=5 // pred_check
      %p1393 = pneg %p1392
    $region82: #{gcn_forward.1} parent=5 // pred_check_branch
      %1395 = sbr.rel (%p1393) target = $region84
    $region83: #{gcn_forward.1} parent=5 // pred_region
      %s1396 = ssub.s32 %s20, 2
      // Predicated region
      $region85: #{gcn_forward.1} parent=83 // pred_check
        %p1397 = pneg %p348
      $region86: #{gcn_forward.1} parent=83 // pred_check_branch
        %1399 = sbr.rel (%p1397) target = $region88
      $region87: #{gcn_forward.1} parent=83 // pred_region
        %p1400 = scmp.lt.s32.totalorder %s26, 1
        %s1401 = scalar_select %p1400, %s26, 1
        %s1402 = smul.addr %s1401, 6
        %s1403 = smul.addr %s1402, 8
        %s1404 = scalar_lea.vmem %s14, %s1403
      $region88: #{gcn_forward.1} parent=83 // pred_fallthru
        _
    $region84: #{gcn_forward.1} parent=5 // pred_fallthru
      _
  $region6: #{gcn_forward.1} parent=0 // loop_footer
    %s24 = sadd.s32 1, %s20
  $region7: #{gcn_forward.1} parent=0 // loop_footer_branch
    %19 = sbr.rel target = $region3
  $region8: #{gcn_forward.1} parent=0 // loop_exit
    _

</llo_original>
